<compile_context>
chip_gen: v7x
topology: tpu7x:2x2x1
jax: 0.10.0
libtpu: 0.0.40
codegen_flags: <defaults>
</compile_context>

<pallas_src>
import math

import jax
import jax.numpy as jnp
from jax.experimental import pallas as pl
from jax.experimental.pallas import tpu as pltpu

# ---- model dimensions -------------------------------------------------------
_C1, _C2, _C3 = 16, 32, 64          # conv output channels
_F1, _F2, _NCLS = 256, 128, 2       # fc widths

# ---- packed-weight row layout (row starts 8-aligned; lane width 256) --------
_ROW_W1, _ROW_B1 = 0, 8             # (8,16)   conv1 taps (K padded 4->8), (1,16) bias
_ROW_W2, _ROW_B2 = 16, 32           # (16,128) fused conv2 taps,           (1,128)
_ROW_W3, _ROW_B3 = 40, 72           # (32,256) fused conv3 taps,           (1,256)
_ROW_F1, _ROW_FB1 = 80, 144         # (64,256) fc1^T,                      (1,256)
_ROW_F2, _ROW_FB2 = 152, 408        # (256,128) fc2^T,                     (1,128)
_ROW_F3, _ROW_FB3 = 416, 544        # (128,2)  fc3^T,                      (1,2)
_WPACK_ROWS, _WPACK_COLS = 552, 256


# ---------------------------------------------------------------------------
# Pallas kernel: entire DeepLeNet forward for the whole (small) batch.
# Working set is well under 1 MB, so a single grid point / full-VMEM blocks.
# ---------------------------------------------------------------------------
def deeplenet_kernel(patches_ref,   # (Sp, 8)   im2col of padded input (K padded to 8)
                     pool_ref,      # (N, Sp)   global-average-pool matrix
                     wpack_ref,     # (552,256) all weights + biases, packed
                     out_ref):      # (N, 2)    softmax probabilities
    w = wpack_ref
    f32 = jnp.float32

    # ---- conv1 (k=2,s=1,p=1, Cin=1) as im2col matmul + ReLU -----------------
    r1 = jnp.maximum(
        jnp.dot(patches_ref[...], w[_ROW_W1:_ROW_W1 + 8, :_C1],
                preferred_element_type=f32)
        + w[_ROW_B1:_ROW_B1 + 1, :_C1], 0.0)                        # (Sp, 16)

    # ---- adaptive_avg_pool2d(1,1): pooling-matrix matmul --------------------
    # (padded rows of r1 are zeroed out by zero columns of the pool matrix)
    x1 = jnp.dot(pool_ref[...], r1, preferred_element_type=f32)     # (N, 16)

    # ---- conv2 on 1x1 map (pad=1,k=2): 4 taps fused on the lane axis --------
    y2 = jnp.maximum(
        jnp.dot(x1, w[_ROW_W2:_ROW_W2 + _C1, :4 * _C2],
                preferred_element_type=f32)
        + w[_ROW_B2:_ROW_B2 + 1, :4 * _C2], 0.0)                    # (N, 128)
    # exact adaptive_avg_pool2d over the 2x2 conv2 output: mean of the 4 taps
    x2 = 0.25 * (y2[:, 0 * _C2:1 * _C2] + y2[:, 1 * _C2:2 * _C2]
                 + y2[:, 2 * _C2:3 * _C2] + y2[:, 3 * _C2:4 * _C2])  # (N, 32)

    # ---- conv3, same structure ----------------------------------------------
    y3 = jnp.maximum(
        jnp.dot(x2, w[_ROW_W3:_ROW_W3 + _C2, :4 * _C3],
                preferred_element_type=f32)
        + w[_ROW_B3:_ROW_B3 + 1, :4 * _C3], 0.0)                    # (N, 256)
    x3 = 0.25 * (y3[:, 0 * _C3:1 * _C3] + y3[:, 1 * _C3:2 * _C3]
                 + y3[:, 2 * _C3:3 * _C3] + y3[:, 3 * _C3:4 * _C3])  # (N, 64)

    # ---- fully-connected stack ----------------------------------------------
    h1 = jnp.maximum(
        jnp.dot(x3, w[_ROW_F1:_ROW_F1 + _C3, :_F1],
                preferred_element_type=f32)
        + w[_ROW_FB1:_ROW_FB1 + 1, :_F1], 0.0)                      # (N, 256)

    h2 = jnp.maximum(
        jnp.dot(h1, w[_ROW_F2:_ROW_F2 + _F1, :_F2],
                preferred_element_type=f32)
        + w[_ROW_FB2:_ROW_FB2 + 1, :_F2], 0.0)                      # (N, 128)

    logits = (jnp.dot(h2, w[_ROW_F3:_ROW_F3 + _F2, :_NCLS],
                      preferred_element_type=f32)
              + w[_ROW_FB3:_ROW_FB3 + 1, :_NCLS])                   # (N, 2)

    # ---- softmax(dim=1): EUP reciprocal + one Newton step (no divide) -------
    m = jnp.max(logits, axis=-1, keepdims=True)
    e = jnp.exp(logits - m)
    denom = jnp.sum(e, axis=-1, keepdims=True)
    inv = pl.reciprocal(denom, approx=True)
    inv = inv * (2.0 - denom * inv)
    out_ref[...] = e * inv


# ---------------------------------------------------------------------------
# Parameter init (deterministic, PyTorch-like uniform(-1/sqrt(fan_in), ...))
# ---------------------------------------------------------------------------
def init_params(key):
    ks = jax.random.split(key, 12)

    def u(k, shape, fan_in):
        bound = 1.0 / math.sqrt(fan_in)
        return jax.random.uniform(k, shape, jnp.float32, -bound, bound)

    return {
        "w1": u(ks[0], (16, 1, 2, 2), 1 * 2 * 2),   "b1": u(ks[1], (16,), 1 * 2 * 2),
        "w2": u(ks[2], (32, 16, 2, 2), 16 * 2 * 2), "b2": u(ks[3], (32,), 16 * 2 * 2),
        "w3": u(ks[4], (64, 32, 2, 2), 32 * 2 * 2), "b3": u(ks[5], (64,), 32 * 2 * 2),
        "fw1": u(ks[6], (256, 64), 64),   "fb1": u(ks[7], (256,), 64),
        "fw2": u(ks[8], (128, 256), 256), "fb2": u(ks[9], (128,), 256),
        "fw3": u(ks[10], (2, 128), 128),  "fb3": u(ks[11], (2,), 128),
    }


# ---------------------------------------------------------------------------
# One-time packing of weights (single DMA blob) + constant pooling matrix.
# Hoisted out of the per-call path: do this once per parameter set.
# ---------------------------------------------------------------------------
def pack_static(params, batch, height, width):
    ho, wo = height + 1, width + 1
    hw = ho * wo
    s = batch * hw
    sp = ((s + 127) // 128) * 128          # lane-aligned row count for patches/pool

    # conv1 (16,1,2,2) -> (tap, Cout) = (4,16), zero-padded to K=8.
    w1k = jnp.transpose(params["w1"][:, 0], (1, 2, 0)).reshape(4, _C1)
    w1k = jnp.pad(w1k, ((0, 4), (0, 0)))
    # conv2 (32,16,2,2) -> (Cin, tap*Cout) = (16,128); bias tiled over the 4 taps.
    w2f = jnp.transpose(params["w2"], (1, 2, 3, 0)).reshape(_C1, 4 * _C2)
    b2f = jnp.tile(params["b2"], 4).reshape(1, 4 * _C2)
    # conv3 (64,32,2,2) -> (Cin, tap*Cout) = (32,256); bias tiled over the 4 taps.
    w3f = jnp.transpose(params["w3"], (1, 2, 3, 0)).reshape(_C2, 4 * _C3)
    b3f = jnp.tile(params["b3"], 4).reshape(1, 4 * _C3)
    # fc weights transposed once (torch Linear stores (out,in)).
    f1k = params["fw1"].T          # (64, 256)
    f2k = params["fw2"].T          # (256, 128)
    f3k = params["fw3"].T          # (128, 2)

    wpack = jnp.zeros((_WPACK_ROWS, _WPACK_COLS), jnp.float32)

    def put(buf, row, arr):
        r, c = arr.shape
        return buf.at[row:row + r, :c].set(arr.astype(jnp.float32))

    wpack = put(wpack, _ROW_W1, w1k)
    wpack = put(wpack, _ROW_B1, params["b1"].reshape(1, _C1))
    wpack = put(wpack, _ROW_W2, w2f)
    wpack = put(wpack, _ROW_B2, b2f)
    wpack = put(wpack, _ROW_W3, w3f)
    wpack = put(wpack, _ROW_B3, b3f)
    wpack = put(wpack, _ROW_F1, f1k)
    wpack = put(wpack, _ROW_FB1, params["fb1"].reshape(1, _F1))
    wpack = put(wpack, _ROW_F2, f2k)
    wpack = put(wpack, _ROW_FB2, params["fb2"].reshape(1, _F2))
    wpack = put(wpack, _ROW_F3, f3k)
    wpack = put(wpack, _ROW_FB3, params["fb3"].reshape(1, _NCLS))

    # pooling matrix: pool[n, n*hw + t] = 1/hw, zero elsewhere (incl. padded rows)
    rows = jnp.arange(sp)
    pool = (((rows[None, :] // hw) == jnp.arange(batch)[:, None])
            & (rows[None, :] < s)).astype(jnp.float32) / float(hw)
    return wpack, pool


# ---------------------------------------------------------------------------
# Per-call wrapper: pad + im2col (layout plumbing) + pallas_call.  3 input DMAs.
# ---------------------------------------------------------------------------
@jax.jit
def deeplenet_forward(x_nchw, wpack, pool):
    n, c, h, wdt = x_nchw.shape
    assert c == 1, "conv1 expects a single input channel"
    ho, wo = h + 1, wdt + 1
    s = n * ho * wo
    sp = pool.shape[1]

    # pad=1 and im2col for the k=2/s=1 conv; tap column order p = kh*2 + kw
    # matches the packed conv1 weights.
    xp = jnp.pad(x_nchw[:, 0].astype(jnp.float32), ((0, 0), (1, 1), (1, 1)))
    taps = [xp[:, kh:kh + ho, kw:kw + wo] for kh in (0, 1) for kw in (0, 1)]
    patches = jnp.stack(taps, axis=-1).reshape(s, 4)
    patches = jnp.pad(patches, ((0, sp - s), (0, 4)))    # (Sp, 8): rows lane-aligned, K->8

    vmem = pl.BlockSpec(memory_space=pltpu.MemorySpace.VMEM)
    return pl.pallas_call(
        deeplenet_kernel,
        out_shape=jax.ShapeDtypeStruct((n, _NCLS), jnp.float32),
        in_specs=[vmem, vmem, vmem],
        out_specs=vmem,
    )(patches, pool, wpack)


# ---------------------------------------------------------------------------
# Pure-JAX reference (uses lax.conv) for a correctness sanity check.
# ---------------------------------------------------------------------------
def deeplenet_reference(x_nchw, params):
    def conv(h, w, b):
        y = jax.lax.conv_general_dilated(
            h, w, window_strides=(1, 1), padding=((1, 1), (1, 1)),
            dimension_numbers=("NCHW", "OIHW", "NCHW"))
        return y + b[None, :, None, None]

    h = x_nchw.astype(jnp.float32)
    h = jnp.mean(jax.nn.relu(conv(h, params["w1"], params["b1"])), axis=(2, 3), keepdims=True)
    h = jnp.mean(jax.nn.relu(conv(h, params["w2"], params["b2"])), axis=(2, 3), keepdims=True)
    h = jnp.mean(jax.nn.relu(conv(h, params["w3"], params["b3"])), axis=(2, 3), keepdims=True)
    h = h.reshape(h.shape[0], -1)
    h = jax.nn.relu(h @ params["fw1"].T + params["fb1"])
    h = jax.nn.relu(h @ params["fw2"].T + params["fb2"])
    logits = h @ params["fw3"].T + params["fb3"]
    return jax.nn.softmax(logits, axis=1)


if __name__ == "__main__":
    key = jax.random.PRNGKey(0)
    k_x, k_p = jax.random.split(key)

    x = jax.random.normal(k_x, (2, 1, 16, 16), dtype=jnp.float32)   # NCHW, C=1
    params = init_params(k_p)

    wpack, pool = pack_static(params, batch=2, height=16, width=16)  # one-time packing

    out = deeplenet_forward(x, wpack, pool)
    out = jax.block_until_ready(out)

    ref = jax.block_until_ready(deeplenet_reference(x, params))

    assert out.shape == (2, 2), out.shape
    assert bool(jnp.all(jnp.isfinite(out)))
    assert bool(jnp.allclose(jnp.sum(out, axis=1), 1.0, atol=1e-4))
    assert bool(jnp.allclose(out, ref, atol=2e-3, rtol=2e-3)), (out, ref)

    print("KERNEL_OK")
</pallas_src>

<mosaic_0001>
module attributes {stable_mosaic.version = 11 : i64} {
  func.func @deeplenet_kernel(%arg0: memref<640x8xf32, #tpu.memory_space<vmem>>, %arg1: memref<2x640xf32, #tpu.memory_space<vmem>>, %arg2: memref<552x256xf32, #tpu.memory_space<vmem>>, %arg3: memref<2x2xf32, #tpu.memory_space<vmem>>) attributes {dimension_semantics = [], scalar_prefetch = 0 : i64, scratch_operands = 0 : i64, tpu.core_type = #tpu.core_type<tc>} {
    %c0 = arith.constant 0 : index
    %c0_0 = arith.constant 0 : index
    %0 = vector.load %arg0[%c0, %c0_0] : memref<640x8xf32, #tpu.memory_space<vmem>>, vector<640x8xf32>
    %c0_1 = arith.constant 0 : index
    %c0_2 = arith.constant 0 : index
    %1 = vector.load %arg2[%c0_1, %c0_2] : memref<552x256xf32, #tpu.memory_space<vmem>>, vector<8x16xf32>
    %cst = arith.constant dense<0.000000e+00> : vector<640x16xf32>
    %2 = tpu.matmul %0, %1, %cst {dimension_numbers = #tpu.dot_dimension_numbers<[1], [0], [0], [1], [0, 0, 1, 1], [], []>} : vector<640x8xf32>, vector<8x16xf32>, vector<640x16xf32> -> vector<640x16xf32>
    %c8 = arith.constant 8 : index
    %c0_3 = arith.constant 0 : index
    %3 = vector.load %arg2[%c8, %c0_3] : memref<552x256xf32, #tpu.memory_space<vmem>>, vector<1x16xf32>
    %4 = vector.broadcast %3 : vector<1x16xf32> to vector<640x16xf32>
    %5 = arith.addf %2, %4 : vector<640x16xf32>
    %cst_4 = arith.constant 0.000000e+00 : f32
    %6 = vector.broadcast %cst_4 : f32 to vector<640x16xf32>
    %7 = arith.maximumf %5, %6 : vector<640x16xf32>
    %c0_5 = arith.constant 0 : index
    %c0_6 = arith.constant 0 : index
    %8 = vector.load %arg1[%c0_5, %c0_6] : memref<2x640xf32, #tpu.memory_space<vmem>>, vector<2x640xf32>
    %cst_7 = arith.constant dense<0.000000e+00> : vector<2x16xf32>
    %9 = tpu.matmul %8, %7, %cst_7 {dimension_numbers = #tpu.dot_dimension_numbers<[1], [0], [0], [1], [0, 0, 1, 1], [], []>} : vector<2x640xf32>, vector<640x16xf32>, vector<2x16xf32> -> vector<2x16xf32>
    %c16 = arith.constant 16 : index
    %c0_8 = arith.constant 0 : index
    %10 = vector.load %arg2[%c16, %c0_8] : memref<552x256xf32, #tpu.memory_space<vmem>>, vector<16x128xf32>
    %cst_9 = arith.constant dense<0.000000e+00> : vector<2x128xf32>
    %11 = tpu.matmul %9, %10, %cst_9 {dimension_numbers = #tpu.dot_dimension_numbers<[1], [0], [0], [1], [0, 0, 1, 1], [], []>} : vector<2x16xf32>, vector<16x128xf32>, vector<2x128xf32> -> vector<2x128xf32>
    %c32 = arith.constant 32 : index
    %c0_10 = arith.constant 0 : index
    %12 = vector.load %arg2[%c32, %c0_10] : memref<552x256xf32, #tpu.memory_space<vmem>>, vector<1x128xf32>
    %13 = vector.broadcast %12 : vector<1x128xf32> to vector<2x128xf32>
    %14 = arith.addf %11, %13 : vector<2x128xf32>
    %cst_11 = arith.constant 0.000000e+00 : f32
    %15 = vector.broadcast %cst_11 : f32 to vector<2x128xf32>
    %16 = arith.maximumf %14, %15 : vector<2x128xf32>
    %17 = vector.extract_strided_slice %16 {offsets = [0, 0], sizes = [2, 32], strides = [1, 1]} : vector<2x128xf32> to vector<2x32xf32>
    %18 = vector.extract_strided_slice %16 {offsets = [0, 32], sizes = [2, 32], strides = [1, 1]} : vector<2x128xf32> to vector<2x32xf32>
    %19 = arith.addf %17, %18 : vector<2x32xf32>
    %20 = vector.extract_strided_slice %16 {offsets = [0, 64], sizes = [2, 32], strides = [1, 1]} : vector<2x128xf32> to vector<2x32xf32>
    %21 = arith.addf %19, %20 : vector<2x32xf32>
    %22 = vector.extract_strided_slice %16 {offsets = [0, 96], sizes = [2, 32], strides = [1, 1]} : vector<2x128xf32> to vector<2x32xf32>
    %23 = arith.addf %21, %22 : vector<2x32xf32>
    %cst_12 = arith.constant 2.500000e-01 : f32
    %24 = vector.broadcast %cst_12 : f32 to vector<2x32xf32>
    %25 = arith.mulf %24, %23 : vector<2x32xf32>
    %c40 = arith.constant 40 : index
    %c0_13 = arith.constant 0 : index
    %26 = vector.load %arg2[%c40, %c0_13] : memref<552x256xf32, #tpu.memory_space<vmem>>, vector<32x256xf32>
    %cst_14 = arith.constant dense<0.000000e+00> : vector<2x256xf32>
    %27 = tpu.matmul %25, %26, %cst_14 {dimension_numbers = #tpu.dot_dimension_numbers<[1], [0], [0], [1], [0, 0, 1, 1], [], []>} : vector<2x32xf32>, vector<32x256xf32>, vector<2x256xf32> -> vector<2x256xf32>
    %c72 = arith.constant 72 : index
    %c0_15 = arith.constant 0 : index
    %28 = vector.load %arg2[%c72, %c0_15] : memref<552x256xf32, #tpu.memory_space<vmem>>, vector<1x256xf32>
    %29 = vector.broadcast %28 : vector<1x256xf32> to vector<2x256xf32>
    %30 = arith.addf %27, %29 : vector<2x256xf32>
    %cst_16 = arith.constant 0.000000e+00 : f32
    %31 = vector.broadcast %cst_16 : f32 to vector<2x256xf32>
    %32 = arith.maximumf %30, %31 : vector<2x256xf32>
    %33 = vector.extract_strided_slice %32 {offsets = [0, 0], sizes = [2, 64], strides = [1, 1]} : vector<2x256xf32> to vector<2x64xf32>
    %34 = vector.extract_strided_slice %32 {offsets = [0, 64], sizes = [2, 64], strides = [1, 1]} : vector<2x256xf32> to vector<2x64xf32>
    %35 = arith.addf %33, %34 : vector<2x64xf32>
    %36 = vector.extract_strided_slice %32 {offsets = [0, 128], sizes = [2, 64], strides = [1, 1]} : vector<2x256xf32> to vector<2x64xf32>
    %37 = arith.addf %35, %36 : vector<2x64xf32>
    %38 = vector.extract_strided_slice %32 {offsets = [0, 192], sizes = [2, 64], strides = [1, 1]} : vector<2x256xf32> to vector<2x64xf32>
    %39 = arith.addf %37, %38 : vector<2x64xf32>
    %cst_17 = arith.constant 2.500000e-01 : f32
    %40 = vector.broadcast %cst_17 : f32 to vector<2x64xf32>
    %41 = arith.mulf %40, %39 : vector<2x64xf32>
    %c80 = arith.constant 80 : index
    %c0_18 = arith.constant 0 : index
    %42 = vector.load %arg2[%c80, %c0_18] : memref<552x256xf32, #tpu.memory_space<vmem>>, vector<64x256xf32>
    %cst_19 = arith.constant dense<0.000000e+00> : vector<2x256xf32>
    %43 = tpu.matmul %41, %42, %cst_19 {dimension_numbers = #tpu.dot_dimension_numbers<[1], [0], [0], [1], [0, 0, 1, 1], [], []>} : vector<2x64xf32>, vector<64x256xf32>, vector<2x256xf32> -> vector<2x256xf32>
    %c144 = arith.constant 144 : index
    %c0_20 = arith.constant 0 : index
    %44 = vector.load %arg2[%c144, %c0_20] : memref<552x256xf32, #tpu.memory_space<vmem>>, vector<1x256xf32>
    %45 = vector.broadcast %44 : vector<1x256xf32> to vector<2x256xf32>
    %46 = arith.addf %43, %45 : vector<2x256xf32>
    %cst_21 = arith.constant 0.000000e+00 : f32
    %47 = vector.broadcast %cst_21 : f32 to vector<2x256xf32>
    %48 = arith.maximumf %46, %47 : vector<2x256xf32>
    %c152 = arith.constant 152 : index
    %c0_22 = arith.constant 0 : index
    %49 = vector.load %arg2[%c152, %c0_22] : memref<552x256xf32, #tpu.memory_space<vmem>>, vector<256x128xf32>
    %cst_23 = arith.constant dense<0.000000e+00> : vector<2x128xf32>
    %50 = tpu.matmul %48, %49, %cst_23 {dimension_numbers = #tpu.dot_dimension_numbers<[1], [0], [0], [1], [0, 0, 1, 1], [], []>} : vector<2x256xf32>, vector<256x128xf32>, vector<2x128xf32> -> vector<2x128xf32>
    %c408 = arith.constant 408 : index
    %c0_24 = arith.constant 0 : index
    %51 = vector.load %arg2[%c408, %c0_24] : memref<552x256xf32, #tpu.memory_space<vmem>>, vector<1x128xf32>
    %52 = vector.broadcast %51 : vector<1x128xf32> to vector<2x128xf32>
    %53 = arith.addf %50, %52 : vector<2x128xf32>
    %cst_25 = arith.constant 0.000000e+00 : f32
    %54 = vector.broadcast %cst_25 : f32 to vector<2x128xf32>
    %55 = arith.maximumf %53, %54 : vector<2x128xf32>
    %c416 = arith.constant 416 : index
    %c0_26 = arith.constant 0 : index
    %56 = vector.load %arg2[%c416, %c0_26] : memref<552x256xf32, #tpu.memory_space<vmem>>, vector<128x2xf32>
    %cst_27 = arith.constant dense<0.000000e+00> : vector<2x2xf32>
    %57 = tpu.matmul %55, %56, %cst_27 {dimension_numbers = #tpu.dot_dimension_numbers<[1], [0], [0], [1], [0, 0, 1, 1], [], []>} : vector<2x128xf32>, vector<128x2xf32>, vector<2x2xf32> -> vector<2x2xf32>
    %c544 = arith.constant 544 : index
    %c0_28 = arith.constant 0 : index
    %58 = vector.load %arg2[%c544, %c0_28] : memref<552x256xf32, #tpu.memory_space<vmem>>, vector<1x2xf32>
    %59 = vector.broadcast %58 : vector<1x2xf32> to vector<2x2xf32>
    %60 = arith.addf %57, %59 : vector<2x2xf32>
    %cst_29 = arith.constant dense<0xFF800000> : vector<2xf32>
    %61 = vector.multi_reduction <maximumf>, %60, %cst_29 [1] : vector<2x2xf32> to vector<2xf32>
    %62 = vector.shape_cast %61 : vector<2xf32> to vector<2x1xf32>
    %63 = vector.broadcast %62 : vector<2x1xf32> to vector<2x2xf32>
    %64 = arith.subf %60, %63 : vector<2x2xf32>
    %65 = math.exp %64 : vector<2x2xf32>
    %cst_30 = arith.constant dense<0.000000e+00> : vector<2xf32>
    %66 = vector.multi_reduction <add>, %65, %cst_30 [1] : vector<2x2xf32> to vector<2xf32>
    %67 = vector.shape_cast %66 : vector<2xf32> to vector<2x1xf32>
    %68 = tpu.reciprocal %67 {approx = true} : vector<2x1xf32> -> vector<2x1xf32>
    %69 = arith.mulf %67, %68 : vector<2x1xf32>
    %cst_31 = arith.constant 2.000000e+00 : f32
    %70 = vector.broadcast %cst_31 : f32 to vector<2x1xf32>
    %71 = arith.subf %70, %69 : vector<2x1xf32>
    %72 = arith.mulf %68, %71 : vector<2x1xf32>
    %73 = vector.broadcast %72 : vector<2x1xf32> to vector<2x2xf32>
    %74 = arith.mulf %65, %73 : vector<2x2xf32>
    %c0_32 = arith.constant 0 : index
    %c0_33 = arith.constant 0 : index
    %75 = vector.load %arg3[%c0_32, %c0_33] : memref<2x2xf32, #tpu.memory_space<vmem>>, vector<2x2xf32>
    tpu.vector_store %arg3[%c0_32, %c0_33], %74 {strides = array<i32>} : memref<2x2xf32, #tpu.memory_space<vmem>>, vector<2x2xf32>,
    return
  }
}

</mosaic_0001>

<llo_original>
// kernel: deeplenet_forward.1
$region0: #{deeplenet_forward.1}
  #allocation0 [shape = 'u32[]', space=smem, size = 0x4, offset = 0x4, fixed_abs, tag = 'smem constant byte address 0x4 - core index']
  #allocation1 [shape = 'u32[144,128]{1,0:T(1,128)}', space=vmem, size = 0x12000, scoped, tag = 'internal scratch']
  %s0 = inlined_call_operand.vmem [shape: f32[640,8], index: 0, kind: input, shape index: {}]
  %s1 = inlined_call_operand.vmem [shape: f32[2,640], index: 1, kind: input, shape index: {}]
  %s2 = inlined_call_operand.vmem [shape: f32[552,256], index: 2, kind: input, shape index: {}]
  %s3 = inlined_call_operand.hbm [shape: f32[2,2], index: 3, kind: output, shape index: {}]
  %s4 = sld [smem:[#allocation0]]
  $region22: #{deeplenet_forward.1} parent=0
    _
  %s6 = ssub.s32 1, %s4
  %s7 = scalar_select 0, %s6, %s4
  $region1: #{deeplenet_forward.1} parent=0
    #allocation2 [shape = 'u8[1024]{0}', space=vmem, size = 0x400, scoped, tag = 'output window, operand 0, single buffered']
    #allocation3 [shape = 's32[1]{0}', space=sflag, size = 0x4, scoped, tag = 'scoped memory for deeplenet_forward.1']
    %8 = vsyncpa [#allocation3], 0
    // Predicated region
    $region2: #{deeplenet_forward.1} parent=1 // pred_check
      _
    $region3: #{deeplenet_forward.1} parent=1 // pred_check_branch
      %10 = sbr.rel (0) target = $region5
    $region4: #{deeplenet_forward.1} parent=1 // pred_region
      _
    $region5: #{deeplenet_forward.1} parent=1 // pred_fallthru
      _
    // Predicated region
    $region6: #{deeplenet_forward.1} parent=1 // pred_check
      _
    $region7: #{deeplenet_forward.1} parent=1 // pred_check_branch
      %12 = sbr.rel (0) target = $region9
    $region8: #{deeplenet_forward.1} parent=1 // pred_region
      _
    $region9: #{deeplenet_forward.1} parent=1 // pred_fallthru
      _
    // Predicated region
    $region10: #{deeplenet_forward.1} parent=1 // pred_check
      _
    $region11: #{deeplenet_forward.1} parent=1 // pred_check_branch
      %14 = sbr.rel (0) target = $region13
    $region12: #{deeplenet_forward.1} parent=1 // pred_region
      _
    $region13: #{deeplenet_forward.1} parent=1 // pred_fallthru
      _
    %v15 = vld [vmem:[%s0] sm:$0xff]
    %v16 = vld [vmem:[%s0 + $0x8] sm:$0xff]
    %v17 = vld [vmem:[%s0 + $0x10] sm:$0xff]
    %v18 = vld [vmem:[%s0 + $0x18] sm:$0xff]
    %v19 = vld [vmem:[%s0 + $0x20] sm:$0xff]
    %v20 = vld [vmem:[%s0 + $0x28] sm:$0xff]
    %v21 = vld [vmem:[%s0 + $0x30] sm:$0xff]
    %v22 = vld [vmem:[%s0 + $0x38] sm:$0xff]
    %v23 = vld [vmem:[%s0 + $0x40] sm:$0xff]
    %v24 = vld [vmem:[%s0 + $0x48] sm:$0xff]
    %v25 = vld [vmem:[%s0 + $0x50] sm:$0xff]
    %v26 = vld [vmem:[%s0 + $0x58] sm:$0xff]
    %v27 = vld [vmem:[%s0 + $0x60] sm:$0xff]
    %v28 = vld [vmem:[%s0 + $0x68] sm:$0xff]
    %v29 = vld [vmem:[%s0 + $0x70] sm:$0xff]
    %v30 = vld [vmem:[%s0 + $0x78] sm:$0xff]
    %v31 = vld [vmem:[%s0 + $0x80] sm:$0xff]
    %v32 = vld [vmem:[%s0 + $0x88] sm:$0xff]
    %v33 = vld [vmem:[%s0 + $0x90] sm:$0xff]
    %v34 = vld [vmem:[%s0 + $0x98] sm:$0xff]
    %v35 = vld [vmem:[%s0 + $0xa0] sm:$0xff]
    %v36 = vld [vmem:[%s0 + $0xa8] sm:$0xff]
    %v37 = vld [vmem:[%s0 + $0xb0] sm:$0xff]
    %v38 = vld [vmem:[%s0 + $0xb8] sm:$0xff]
    %v39 = vld [vmem:[%s0 + $0xc0] sm:$0xff]
    %v40 = vld [vmem:[%s0 + $0xc8] sm:$0xff]
    %v41 = vld [vmem:[%s0 + $0xd0] sm:$0xff]
    %v42 = vld [vmem:[%s0 + $0xd8] sm:$0xff]
    %v43 = vld [vmem:[%s0 + $0xe0] sm:$0xff]
    %v44 = vld [vmem:[%s0 + $0xe8] sm:$0xff]
    %v45 = vld [vmem:[%s0 + $0xf0] sm:$0xff]
    %v46 = vld [vmem:[%s0 + $0xf8] sm:$0xff]
    %v47 = vld [vmem:[%s0 + $0x100] sm:$0xff]
    %v48 = vld [vmem:[%s0 + $0x108] sm:$0xff]
    %v49 = vld [vmem:[%s0 + $0x110] sm:$0xff]
    %v50 = vld [vmem:[%s0 + $0x118] sm:$0xff]
    %v51 = vld [vmem:[%s0 + $0x120] sm:$0xff]
    %v52 = vld [vmem:[%s0 + $0x128] sm:$0xff]
    %v53 = vld [vmem:[%s0 + $0x130] sm:$0xff]
    %v54 = vld [vmem:[%s0 + $0x138] sm:$0xff]
    %v55 = vld [vmem:[%s0 + $0x140] sm:$0xff]
    %v56 = vld [vmem:[%s0 + $0x148] sm:$0xff]
    %v57 = vld [vmem:[%s0 + $0x150] sm:$0xff]
    %v58 = vld [vmem:[%s0 + $0x158] sm:$0xff]
    %v59 = vld [vmem:[%s0 + $0x160] sm:$0xff]
    %v60 = vld [vmem:[%s0 + $0x168] sm:$0xff]
    %v61 = vld [vmem:[%s0 + $0x170] sm:$0xff]
    %v62 = vld [vmem:[%s0 + $0x178] sm:$0xff]
    %v63 = vld [vmem:[%s0 + $0x180] sm:$0xff]
    %v64 = vld [vmem:[%s0 + $0x188] sm:$0xff]
    %v65 = vld [vmem:[%s0 + $0x190] sm:$0xff]
    %v66 = vld [vmem:[%s0 + $0x198] sm:$0xff]
    %v67 = vld [vmem:[%s0 + $0x1a0] sm:$0xff]
    %v68 = vld [vmem:[%s0 + $0x1a8] sm:$0xff]
    %v69 = vld [vmem:[%s0 + $0x1b0] sm:$0xff]
    %v70 = vld [vmem:[%s0 + $0x1b8] sm:$0xff]
    %v71 = vld [vmem:[%s0 + $0x1c0] sm:$0xff]
    %v72 = vld [vmem:[%s0 + $0x1c8] sm:$0xff]
    %v73 = vld [vmem:[%s0 + $0x1d0] sm:$0xff]
    %v74 = vld [vmem:[%s0 + $0x1d8] sm:$0xff]
    %v75 = vld [vmem:[%s0 + $0x1e0] sm:$0xff]
    %v76 = vld [vmem:[%s0 + $0x1e8] sm:$0xff]
    %v77 = vld [vmem:[%s0 + $0x1f0] sm:$0xff]
    %v78 = vld [vmem:[%s0 + $0x1f8] sm:$0xff]
    %v79 = vld [vmem:[%s0 + $0x200] sm:$0xff]
    %v80 = vld [vmem:[%s0 + $0x208] sm:$0xff]
    %v81 = vld [vmem:[%s0 + $0x210] sm:$0xff]
    %v82 = vld [vmem:[%s0 + $0x218] sm:$0xff]
    %v83 = vld [vmem:[%s0 + $0x220] sm:$0xff]
    %v84 = vld [vmem:[%s0 + $0x228] sm:$0xff]
    %v85 = vld [vmem:[%s0 + $0x230] sm:$0xff]
    %v86 = vld [vmem:[%s0 + $0x238] sm:$0xff]
    %v87 = vld [vmem:[%s0 + $0x240] sm:$0xff]
    %v88 = vld [vmem:[%s0 + $0x248] sm:$0xff]
    %v89 = vld [vmem:[%s0 + $0x250] sm:$0xff]
    %v90 = vld [vmem:[%s0 + $0x258] sm:$0xff]
    %v91 = vld [vmem:[%s0 + $0x260] sm:$0xff]
    %v92 = vld [vmem:[%s0 + $0x268] sm:$0xff]
    %v93 = vld [vmem:[%s0 + $0x270] sm:$0xff]
    %v94 = vld [vmem:[%s0 + $0x278] sm:$0xff]
    %v95 = vld [vmem:[%s2] sm:$0xff]
    %v96 = vld [vmem:[%s2 + $0x10] ss:$0 sm:$0xff]
    %vm97 = vcmask 64512
    %v99 = vsel %vm97, %v15, 0
    %v102 = vsel %vm97, %v16, 0
    %v105 = vsel %vm97, %v17, 0
    %v108 = vsel %vm97, %v18, 0
    %v111 = vsel %vm97, %v19, 0
    %v114 = vsel %vm97, %v20, 0
    %v117 = vsel %vm97, %v21, 0
    %v120 = vsel %vm97, %v22, 0
    %v123 = vsel %vm97, %v23, 0
    %v126 = vsel %vm97, %v24, 0
    %v129 = vsel %vm97, %v25, 0
    %v132 = vsel %vm97, %v26, 0
    %v135 = vsel %vm97, %v27, 0
    %v138 = vsel %vm97, %v28, 0
    %v141 = vsel %vm97, %v29, 0
    %v144 = vsel %vm97, %v30, 0
    %v147 = vsel %vm97, %v31, 0
    %v150 = vsel %vm97, %v32, 0
    %v153 = vsel %vm97, %v33, 0
    %v156 = vsel %vm97, %v34, 0
    %v159 = vsel %vm97, %v35, 0
    %v162 = vsel %vm97, %v36, 0
    %v165 = vsel %vm97, %v37, 0
    %v168 = vsel %vm97, %v38, 0
    %v171 = vsel %vm97, %v39, 0
    %v174 = vsel %vm97, %v40, 0
    %v177 = vsel %vm97, %v41, 0
    %v180 = vsel %vm97, %v42, 0
    %v183 = vsel %vm97, %v43, 0
    %v186 = vsel %vm97, %v44, 0
    %v189 = vsel %vm97, %v45, 0
    %v192 = vsel %vm97, %v46, 0
    %v195 = vsel %vm97, %v47, 0
    %v198 = vsel %vm97, %v48, 0
    %v201 = vsel %vm97, %v49, 0
    %v204 = vsel %vm97, %v50, 0
    %v207 = vsel %vm97, %v51, 0
    %v210 = vsel %vm97, %v52, 0
    %v213 = vsel %vm97, %v53, 0
    %v216 = vsel %vm97, %v54, 0
    %v219 = vsel %vm97, %v55, 0
    %v222 = vsel %vm97, %v56, 0
    %v225 = vsel %vm97, %v57, 0
    %v228 = vsel %vm97, %v58, 0
    %v231 = vsel %vm97, %v59, 0
    %v234 = vsel %vm97, %v60, 0
    %v237 = vsel %vm97, %v61, 0
    %v240 = vsel %vm97, %v62, 0
    %v243 = vsel %vm97, %v63, 0
    %v246 = vsel %vm97, %v64, 0
    %v249 = vsel %vm97, %v65, 0
    %v252 = vsel %vm97, %v66, 0
    %v255 = vsel %vm97, %v67, 0
    %v258 = vsel %vm97, %v68, 0
    %v261 = vsel %vm97, %v69, 0
    %v264 = vsel %vm97, %v70, 0
    %v267 = vsel %vm97, %v71, 0
    %v270 = vsel %vm97, %v72, 0
    %v273 = vsel %vm97, %v73, 0
    %v276 = vsel %vm97, %v74, 0
    %v279 = vsel %vm97, %v75, 0
    %v282 = vsel %vm97, %v76, 0
    %v285 = vsel %vm97, %v77, 0
    %v288 = vsel %vm97, %v78, 0
    %v291 = vsel %vm97, %v79, 0
    %v294 = vsel %vm97, %v80, 0
    %v297 = vsel %vm97, %v81, 0
    %v300 = vsel %vm97, %v82, 0
    %v303 = vsel %vm97, %v83, 0
    %v306 = vsel %vm97, %v84, 0
    %v309 = vsel %vm97, %v85, 0
    %v312 = vsel %vm97, %v86, 0
    %v315 = vsel %vm97, %v87, 0
    %v318 = vsel %vm97, %v88, 0
    %v321 = vsel %vm97, %v89, 0
    %v324 = vsel %vm97, %v90, 0
    %v327 = vsel %vm97, %v91, 0
    %v330 = vsel %vm97, %v92, 0
    %v333 = vsel %vm97, %v93, 0
    %v336 = vsel %vm97, %v94, 0
    %338 = vmatprep.subr.mxu0 0.0
    %339 = vmatpush1.msra.mxu0 %v95
    %340 = vmatprep.subr.mxu0 0.0
    %341 = vmatpush1.msra.mxu0 0.0
    %342 = vmatprep.subr.mxu0 0.0
    %343 = vmatpush1.msra.mxu0 0.0
    %344 = vmatprep.subr.mxu0 0.0
    %345 = vmatpush1.msra.mxu0 0.0
    %346 = vmatprep.subr.mxu0 0.0
    %347 = vmatpush1.msra.mxu0 0.0
    %348 = vmatprep.subr.mxu0 0.0
    %349 = vmatpush1.msra.mxu0 0.0
    %350 = vmatprep.subr.mxu0 0.0
    %351 = vmatpush1.msra.mxu0 0.0
    %352 = vmatprep.subr.mxu0 0.0
    %353 = vmatpush1.msra.mxu0 0.0
    %354 = vmatprep.subr.mxu0 0.0
    %355 = vmatpush1.msra.mxu0 0.0
    %356 = vmatprep.subr.mxu0 0.0
    %357 = vmatpush1.msra.mxu0 0.0
    %358 = vmatprep.subr.mxu0 0.0
    %359 = vmatpush1.msra.mxu0 0.0
    %360 = vmatprep.subr.mxu0 0.0
    %361 = vmatpush1.msra.mxu0 0.0
    %362 = vmatprep.subr.mxu0 0.0
    %363 = vmatpush1.msra.mxu0 0.0
    %364 = vmatprep.subr.mxu0 0.0
    %365 = vmatpush1.msra.mxu0 0.0
    %366 = vmatprep.subr.mxu0 0.0
    %367 = vmatpush1.msra.mxu0 0.0
    %368 = vmatprep.subr.mxu0 0.0
    %369 = vmatpush1.msra.mxu0 0.0
    %370 = vmatprep.subr.mxu0 0.0
    %371 = vmatpush1.msra.mxu0 0.0
    %372 = vmatprep.subr.mxu0 0.0
    %373 = vmatpush1.msra.mxu0 0.0
    %374 = vmatprep.subr.mxu0 0.0
    %375 = vmatpush1.msra.mxu0 0.0
    %376 = vmatprep.subr.mxu0 0.0
    %377 = vmatpush1.msra.mxu0 0.0
    %378 = vmatprep.subr.mxu0 0.0
    %379 = vmatpush1.msra.mxu0 0.0
    %380 = vmatprep.subr.mxu0 0.0
    %381 = vmatpush1.msra.mxu0 0.0
    %382 = vmatprep.subr.mxu0 0.0
    %383 = vmatpush1.msra.mxu0 0.0
    %384 = vmatprep.subr.mxu0 0.0
    %385 = vmatpush1.msra.mxu0 0.0
    %386 = vmatprep.subr.mxu0 0.0
    %387 = vmatpush1.msra.mxu0 0.0
    %388 = vmatprep.subr.mxu0 0.0
    %389 = vmatpush1.msra.mxu0 0.0
    %390 = vmatprep.subr.mxu0 0.0
    %391 = vmatpush1.msra.mxu0 0.0
    %392 = vmatprep.subr.mxu0 0.0
    %393 = vmatpush1.msra.mxu0 0.0
    %394 = vmatprep.subr.mxu0 0.0
    %395 = vmatpush1.msra.mxu0 0.0
    %396 = vmatprep.subr.mxu0 0.0
    %397 = vmatpush1.msra.mxu0 0.0
    %398 = vmatprep.subr.mxu0 0.0
    %399 = vmatpush1.msra.mxu0 0.0
    %400 = vmatprep.subr.mxu0 0.0
    %401 = vmatpush1.msra.mxu0 0.0
    %402 = vmatprep.mubr.f32.mxu0 0.0
    %403 = vmatmul.mubr.f32.gmra.mrb[0].mxu0 %v99
    %v404 = vpop.f32.mrb[0].mxu0
    %v405 = vadd.f32 %v96, %v404
    %v406 = vpop.f32.mrb[0].mxu0
    %407 = vmatprep.mubr.f32.mxu0 0.0
    %408 = vmatmul.mubr.f32.gmra.mrb[0].mxu0 %v102
    %v409 = vpop.f32.mrb[0].mxu0
    %v410 = vadd.f32 %v96, %v409
    %v411 = vpop.f32.mrb[0].mxu0
    %412 = vmatprep.mubr.f32.mxu0 0.0
    %413 = vmatmul.mubr.f32.gmra.mrb[0].mxu0 %v105
    %v414 = vpop.f32.mrb[0].mxu0
    %v415 = vadd.f32 %v96, %v414
    %v416 = vpop.f32.mrb[0].mxu0
    %417 = vmatprep.mubr.f32.mxu0 0.0
    %418 = vmatmul.mubr.f32.gmra.mrb[0].mxu0 %v108
    %v419 = vpop.f32.mrb[0].mxu0
    %v420 = vadd.f32 %v96, %v419
    %v421 = vpop.f32.mrb[0].mxu0
    %422 = vmatprep.mubr.f32.mxu0 0.0
    %423 = vmatmul.mubr.f32.gmra.mrb[0].mxu0 %v111
    %v424 = vpop.f32.mrb[0].mxu0
    %v425 = vadd.f32 %v96, %v424
    %v426 = vpop.f32.mrb[0].mxu0
    %427 = vmatprep.mubr.f32.mxu0 0.0
    %428 = vmatmul.mubr.f32.gmra.mrb[0].mxu0 %v114
    %v429 = vpop.f32.mrb[0].mxu0
    %v430 = vadd.f32 %v96, %v429
    %v431 = vpop.f32.mrb[0].mxu0
    %432 = vmatprep.mubr.f32.mxu0 0.0
    %433 = vmatmul.mubr.f32.gmra.mrb[0].mxu0 %v117
    %v434 = vpop.f32.mrb[0].mxu0
    %v435 = vadd.f32 %v96, %v434
    %v436 = vpop.f32.mrb[0].mxu0
    %437 = vmatprep.mubr.f32.mxu0 0.0
    %438 = vmatmul.mubr.f32.gmra.mrb[0].mxu0 %v120
    %v439 = vpop.f32.mrb[0].mxu0
    %v440 = vadd.f32 %v96, %v439
    %v441 = vpop.f32.mrb[0].mxu0
    %442 = vmatprep.mubr.f32.mxu0 0.0
    %443 = vmatmul.mubr.f32.gmra.mrb[0].mxu0 %v123
    %v444 = vpop.f32.mrb[0].mxu0
    %v445 = vadd.f32 %v96, %v444
    %v446 = vpop.f32.mrb[0].mxu0
    %447 = vmatprep.mubr.f32.mxu0 0.0
    %448 = vmatmul.mubr.f32.gmra.mrb[0].mxu0 %v126
    %v449 = vpop.f32.mrb[0].mxu0
    %v450 = vadd.f32 %v96, %v449
    %v451 = vpop.f32.mrb[0].mxu0
    %452 = vmatprep.mubr.f32.mxu0 0.0
    %453 = vmatmul.mubr.f32.gmra.mrb[0].mxu0 %v129
    %v454 = vpop.f32.mrb[0].mxu0
    %v455 = vadd.f32 %v96, %v454
    %v456 = vpop.f32.mrb[0].mxu0
    %457 = vmatprep.mubr.f32.mxu0 0.0
    %458 = vmatmul.mubr.f32.gmra.mrb[0].mxu0 %v132
    %v459 = vpop.f32.mrb[0].mxu0
    %v460 = vadd.f32 %v96, %v459
    %v461 = vpop.f32.mrb[0].mxu0
    %462 = vmatprep.mubr.f32.mxu0 0.0
    %463 = vmatmul.mubr.f32.gmra.mrb[0].mxu0 %v135
    %v464 = vpop.f32.mrb[0].mxu0
    %v465 = vadd.f32 %v96, %v464
    %v466 = vpop.f32.mrb[0].mxu0
    %467 = vmatprep.mubr.f32.mxu0 0.0
    %468 = vmatmul.mubr.f32.gmra.mrb[0].mxu0 %v138
    %v469 = vpop.f32.mrb[0].mxu0
    %v470 = vadd.f32 %v96, %v469
    %v471 = vpop.f32.mrb[0].mxu0
    %472 = vmatprep.mubr.f32.mxu0 0.0
    %473 = vmatmul.mubr.f32.gmra.mrb[0].mxu0 %v141
    %v474 = vpop.f32.mrb[0].mxu0
    %v475 = vadd.f32 %v96, %v474
    %v476 = vpop.f32.mrb[0].mxu0
    %477 = vmatprep.mubr.f32.mxu0 0.0
    %478 = vmatmul.mubr.f32.gmra.mrb[0].mxu0 %v144
    %v479 = vpop.f32.mrb[0].mxu0
    %v480 = vadd.f32 %v96, %v479
    %v481 = vpop.f32.mrb[0].mxu0
    %482 = vmatprep.mubr.f32.mxu0 0.0
    %483 = vmatmul.mubr.f32.gmra.mrb[0].mxu0 %v147
    %v484 = vpop.f32.mrb[0].mxu0
    %v485 = vadd.f32 %v96, %v484
    %v486 = vpop.f32.mrb[0].mxu0
    %487 = vmatprep.mubr.f32.mxu0 0.0
    %488 = vmatmul.mubr.f32.gmra.mrb[0].mxu0 %v150
    %v489 = vpop.f32.mrb[0].mxu0
    %v490 = vadd.f32 %v96, %v489
    %v491 = vpop.f32.mrb[0].mxu0
    %492 = vmatprep.mubr.f32.mxu0 0.0
    %493 = vmatmul.mubr.f32.gmra.mrb[0].mxu0 %v153
    %v494 = vpop.f32.mrb[0].mxu0
    %v495 = vadd.f32 %v96, %v494
    %v496 = vpop.f32.mrb[0].mxu0
    %497 = vmatprep.mubr.f32.mxu0 0.0
    %498 = vmatmul.mubr.f32.gmra.mrb[0].mxu0 %v156
    %v499 = vpop.f32.mrb[0].mxu0
    %v500 = vadd.f32 %v96, %v499
    %v501 = vpop.f32.mrb[0].mxu0
    %502 = vmatprep.mubr.f32.mxu0 0.0
    %503 = vmatmul.mubr.f32.gmra.mrb[0].mxu0 %v159
    %v504 = vpop.f32.mrb[0].mxu0
    %v505 = vadd.f32 %v96, %v504
    %v506 = vpop.f32.mrb[0].mxu0
    %507 = vmatprep.mubr.f32.mxu0 0.0
    %508 = vmatmul.mubr.f32.gmra.mrb[0].mxu0 %v162
    %v509 = vpop.f32.mrb[0].mxu0
    %v510 = vadd.f32 %v96, %v509
    %v511 = vpop.f32.mrb[0].mxu0
    %512 = vmatprep.mubr.f32.mxu0 0.0
    %513 = vmatmul.mubr.f32.gmra.mrb[0].mxu0 %v165
    %v514 = vpop.f32.mrb[0].mxu0
    %v515 = vadd.f32 %v96, %v514
    %v516 = vpop.f32.mrb[0].mxu0
    %517 = vmatprep.mubr.f32.mxu0 0.0
    %518 = vmatmul.mubr.f32.gmra.mrb[0].mxu0 %v168
    %v519 = vpop.f32.mrb[0].mxu0
    %v520 = vadd.f32 %v96, %v519
    %v521 = vpop.f32.mrb[0].mxu0
    %522 = vmatprep.mubr.f32.mxu0 0.0
    %523 = vmatmul.mubr.f32.gmra.mrb[0].mxu0 %v171
    %v524 = vpop.f32.mrb[0].mxu0
    %v525 = vadd.f32 %v96, %v524
    %v526 = vpop.f32.mrb[0].mxu0
    %527 = vmatprep.mubr.f32.mxu0 0.0
    %528 = vmatmul.mubr.f32.gmra.mrb[0].mxu0 %v174
    %v529 = vpop.f32.mrb[0].mxu0
    %v530 = vadd.f32 %v96, %v529
    %v531 = vpop.f32.mrb[0].mxu0
    %532 = vmatprep.mubr.f32.mxu0 0.0
    %533 = vmatmul.mubr.f32.gmra.mrb[0].mxu0 %v177
    %v534 = vpop.f32.mrb[0].mxu0
    %v535 = vadd.f32 %v96, %v534
    %v536 = vpop.f32.mrb[0].mxu0
    %537 = vmatprep.mubr.f32.mxu0 0.0
    %538 = vmatmul.mubr.f32.gmra.mrb[0].mxu0 %v180
    %v539 = vpop.f32.mrb[0].mxu0
    %v540 = vadd.f32 %v96, %v539
    %v541 = vpop.f32.mrb[0].mxu0
    %542 = vmatprep.mubr.f32.mxu0 0.0
    %543 = vmatmul.mubr.f32.gmra.mrb[0].mxu0 %v183
    %v544 = vpop.f32.mrb[0].mxu0
    %v545 = vadd.f32 %v96, %v544
    %v546 = vpop.f32.mrb[0].mxu0
    %547 = vmatprep.mubr.f32.mxu0 0.0
    %548 = vmatmul.mubr.f32.gmra.mrb[0].mxu0 %v186
    %v549 = vpop.f32.mrb[0].mxu0
    %v550 = vadd.f32 %v96, %v549
    %v551 = vpop.f32.mrb[0].mxu0
    %552 = vmatprep.mubr.f32.mxu0 0.0
    %553 = vmatmul.mubr.f32.gmra.mrb[0].mxu0 %v189
    %v554 = vpop.f32.mrb[0].mxu0
    %v555 = vadd.f32 %v96, %v554
    %v556 = vpop.f32.mrb[0].mxu0
    %557 = vmatprep.mubr.f32.mxu0 0.0
    %558 = vmatmul.mubr.f32.gmra.mrb[0].mxu0 %v192
    %v559 = vpop.f32.mrb[0].mxu0
    %v560 = vadd.f32 %v96, %v559
    %v561 = vpop.f32.mrb[0].mxu0
    %562 = vmatprep.mubr.f32.mxu0 0.0
    %563 = vmatmul.mubr.f32.gmra.mrb[0].mxu0 %v195
    %v564 = vpop.f32.mrb[0].mxu0
    %v565 = vadd.f32 %v96, %v564
    %v566 = vpop.f32.mrb[0].mxu0
    %567 = vmatprep.mubr.f32.mxu0 0.0
    %568 = vmatmul.mubr.f32.gmra.mrb[0].mxu0 %v198
    %v569 = vpop.f32.mrb[0].mxu0
    %v570 = vadd.f32 %v96, %v569
    %v571 = vpop.f32.mrb[0].mxu0
    %572 = vmatprep.mubr.f32.mxu0 0.0
    %573 = vmatmul.mubr.f32.gmra.mrb[0].mxu0 %v201
    %v574 = vpop.f32.mrb[0].mxu0
    %v575 = vadd.f32 %v96, %v574
    %v576 = vpop.f32.mrb[0].mxu0
    %577 = vmatprep.mubr.f32.mxu0 0.0
    %578 = vmatmul.mubr.f32.gmra.mrb[0].mxu0 %v204
    %v579 = vpop.f32.mrb[0].mxu0
    %v580 = vadd.f32 %v96, %v579
    %v581 = vpop.f32.mrb[0].mxu0
    %582 = vmatprep.mubr.f32.mxu0 0.0
    %583 = vmatmul.mubr.f32.gmra.mrb[0].mxu0 %v207
    %v584 = vpop.f32.mrb[0].mxu0
    %v585 = vadd.f32 %v96, %v584
    %v586 = vpop.f32.mrb[0].mxu0
    %587 = vmatprep.mubr.f32.mxu0 0.0
    %588 = vmatmul.mubr.f32.gmra.mrb[0].mxu0 %v210
    %v589 = vpop.f32.mrb[0].mxu0
    %v590 = vadd.f32 %v96, %v589
    %v591 = vpop.f32.mrb[0].mxu0
    %592 = vmatprep.mubr.f32.mxu0 0.0
    %593 = vmatmul.mubr.f32.gmra.mrb[0].mxu0 %v213
    %v594 = vpop.f32.mrb[0].mxu0
    %v595 = vadd.f32 %v96, %v594
    %v596 = vpop.f32.mrb[0].mxu0
    %597 = vmatprep.mubr.f32.mxu0 0.0
    %598 = vmatmul.mubr.f32.gmra.mrb[0].mxu0 %v216
    %v599 = vpop.f32.mrb[0].mxu0
    %v600 = vadd.f32 %v96, %v599
    %v601 = vpop.f32.mrb[0].mxu0
    %602 = vmatprep.mubr.f32.mxu0 0.0
    %603 = vmatmul.mubr.f32.gmra.mrb[0].mxu0 %v219
    %v604 = vpop.f32.mrb[0].mxu0
    %v605 = vadd.f32 %v96, %v604
    %v606 = vpop.f32.mrb[0].mxu0
    %607 = vmatprep.mubr.f32.mxu0 0.0
    %608 = vmatmul.mubr.f32.gmra.mrb[0].mxu0 %v222
    %v609 = vpop.f32.mrb[0].mxu0
    %v610 = vadd.f32 %v96, %v609
    %v611 = vpop.f32.mrb[0].mxu0
    %612 = vmatprep.mubr.f32.mxu0 0.0
    %613 = vmatmul.mubr.f32.gmra.mrb[0].mxu0 %v225
    %v614 = vpop.f32.mrb[0].mxu0
    %v615 = vadd.f32 %v96, %v614
    %v616 = vpop.f32.mrb[0].mxu0
    %617 = vmatprep.mubr.f32.mxu0 0.0
    %618 = vmatmul.mubr.f32.gmra.mrb[0].mxu0 %v228
    %v619 = vpop.f32.mrb[0].mxu0
    %v620 = vadd.f32 %v96, %v619
    %v621 = vpop.f32.mrb[0].mxu0
    %622 = vmatprep.mubr.f32.mxu0 0.0
    %623 = vmatmul.mubr.f32.gmra.mrb[0].mxu0 %v231
    %v624 = vpop.f32.mrb[0].mxu0
    %v625 = vadd.f32 %v96, %v624
    %v626 = vpop.f32.mrb[0].mxu0
    %627 = vmatprep.mubr.f32.mxu0 0.0
    %628 = vmatmul.mubr.f32.gmra.mrb[0].mxu0 %v234
    %v629 = vpop.f32.mrb[0].mxu0
    %v630 = vadd.f32 %v96, %v629
    %v631 = vpop.f32.mrb[0].mxu0
    %632 = vmatprep.mubr.f32.mxu0 0.0
    %633 = vmatmul.mubr.f32.gmra.mrb[0].mxu0 %v237
    %v634 = vpop.f32.mrb[0].mxu0
    %v635 = vadd.f32 %v96, %v634
    %v636 = vpop.f32.mrb[0].mxu0
    %637 = vmatprep.mubr.f32.mxu0 0.0
    %638 = vmatmul.mubr.f32.gmra.mrb[0].mxu0 %v240
    %v639 = vpop.f32.mrb[0].mxu0
    %v640 = vadd.f32 %v96, %v639
    %v641 = vpop.f32.mrb[0].mxu0
    %642 = vmatprep.mubr.f32.mxu0 0.0
    %643 = vmatmul.mubr.f32.gmra.mrb[0].mxu0 %v243
    %v644 = vpop.f32.mrb[0].mxu0
    %v645 = vadd.f32 %v96, %v644
    %v646 = vpop.f32.mrb[0].mxu0
    %647 = vmatprep.mubr.f32.mxu0 0.0
    %648 = vmatmul.mubr.f32.gmra.mrb[0].mxu0 %v246
    %v649 = vpop.f32.mrb[0].mxu0
    %v650 = vadd.f32 %v96, %v649
    %v651 = vpop.f32.mrb[0].mxu0
    %652 = vmatprep.mubr.f32.mxu0 0.0
    %653 = vmatmul.mubr.f32.gmra.mrb[0].mxu0 %v249
    %v654 = vpop.f32.mrb[0].mxu0
    %v655 = vadd.f32 %v96, %v654
    %v656 = vpop.f32.mrb[0].mxu0
    %657 = vmatprep.mubr.f32.mxu0 0.0
    %658 = vmatmul.mubr.f32.gmra.mrb[0].mxu0 %v252
    %v659 = vpop.f32.mrb[0].mxu0
    %v660 = vadd.f32 %v96, %v659
    %v661 = vpop.f32.mrb[0].mxu0
    %662 = vmatprep.mubr.f32.mxu0 0.0
    %663 = vmatmul.mubr.f32.gmra.mrb[0].mxu0 %v255
    %v664 = vpop.f32.mrb[0].mxu0
    %v665 = vadd.f32 %v96, %v664
    %v666 = vpop.f32.mrb[0].mxu0
    %667 = vmatprep.mubr.f32.mxu0 0.0
    %668 = vmatmul.mubr.f32.gmra.mrb[0].mxu0 %v258
    %v669 = vpop.f32.mrb[0].mxu0
    %v670 = vadd.f32 %v96, %v669
    %v671 = vpop.f32.mrb[0].mxu0
    %672 = vmatprep.mubr.f32.mxu0 0.0
    %673 = vmatmul.mubr.f32.gmra.mrb[0].mxu0 %v261
    %v674 = vpop.f32.mrb[0].mxu0
    %v675 = vadd.f32 %v96, %v674
    %v676 = vpop.f32.mrb[0].mxu0
    %677 = vmatprep.mubr.f32.mxu0 0.0
    %678 = vmatmul.mubr.f32.gmra.mrb[0].mxu0 %v264
    %v679 = vpop.f32.mrb[0].mxu0
    %v680 = vadd.f32 %v96, %v679
    %v681 = vpop.f32.mrb[0].mxu0
    %682 = vmatprep.mubr.f32.mxu0 0.0
    %683 = vmatmul.mubr.f32.gmra.mrb[0].mxu0 %v267
    %v684 = vpop.f32.mrb[0].mxu0
    %v685 = vadd.f32 %v96, %v684
    %v686 = vpop.f32.mrb[0].mxu0
    %687 = vmatprep.mubr.f32.mxu0 0.0
    %688 = vmatmul.mubr.f32.gmra.mrb[0].mxu0 %v270
    %v689 = vpop.f32.mrb[0].mxu0
    %v690 = vadd.f32 %v96, %v689
    %v691 = vpop.f32.mrb[0].mxu0
    %692 = vmatprep.mubr.f32.mxu0 0.0
    %693 = vmatmul.mubr.f32.gmra.mrb[0].mxu0 %v273
    %v694 = vpop.f32.mrb[0].mxu0
    %v695 = vadd.f32 %v96, %v694
    %v696 = vpop.f32.mrb[0].mxu0
    %697 = vmatprep.mubr.f32.mxu0 0.0
    %698 = vmatmul.mubr.f32.gmra.mrb[0].mxu0 %v276
    %v699 = vpop.f32.mrb[0].mxu0
    %v700 = vadd.f32 %v96, %v699
    %v701 = vpop.f32.mrb[0].mxu0
    %702 = vmatprep.mubr.f32.mxu0 0.0
    %703 = vmatmul.mubr.f32.gmra.mrb[0].mxu0 %v279
    %v704 = vpop.f32.mrb[0].mxu0
    %v705 = vadd.f32 %v96, %v704
    %v706 = vpop.f32.mrb[0].mxu0
    %707 = vmatprep.mubr.f32.mxu0 0.0
    %708 = vmatmul.mubr.f32.gmra.mrb[0].mxu0 %v282
    %v709 = vpop.f32.mrb[0].mxu0
    %v710 = vadd.f32 %v96, %v709
    %v711 = vpop.f32.mrb[0].mxu0
    %712 = vmatprep.mubr.f32.mxu0 0.0
    %713 = vmatmul.mubr.f32.gmra.mrb[0].mxu0 %v285
    %v714 = vpop.f32.mrb[0].mxu0
    %v715 = vadd.f32 %v96, %v714
    %v716 = vpop.f32.mrb[0].mxu0
    %717 = vmatprep.mubr.f32.mxu0 0.0
    %718 = vmatmul.mubr.f32.gmra.mrb[0].mxu0 %v288
    %v719 = vpop.f32.mrb[0].mxu0
    %v720 = vadd.f32 %v96, %v719
    %v721 = vpop.f32.mrb[0].mxu0
    %722 = vmatprep.mubr.f32.mxu0 0.0
    %723 = vmatmul.mubr.f32.gmra.mrb[0].mxu0 %v291
    %v724 = vpop.f32.mrb[0].mxu0
    %v725 = vadd.f32 %v96, %v724
    %v726 = vpop.f32.mrb[0].mxu0
    %727 = vmatprep.mubr.f32.mxu0 0.0
    %728 = vmatmul.mubr.f32.gmra.mrb[0].mxu0 %v294
    %v729 = vpop.f32.mrb[0].mxu0
    %v730 = vadd.f32 %v96, %v729
    %v731 = vpop.f32.mrb[0].mxu0
    %732 = vmatprep.mubr.f32.mxu0 0.0
    %733 = vmatmul.mubr.f32.gmra.mrb[0].mxu0 %v297
    %v734 = vpop.f32.mrb[0].mxu0
    %v735 = vadd.f32 %v96, %v734
    %v736 = vpop.f32.mrb[0].mxu0
    %737 = vmatprep.mubr.f32.mxu0 0.0
    %738 = vmatmul.mubr.f32.gmra.mrb[0].mxu0 %v300
    %v739 = vpop.f32.mrb[0].mxu0
    %v740 = vadd.f32 %v96, %v739
    %v741 = vpop.f32.mrb[0].mxu0
    %742 = vmatprep.mubr.f32.mxu0 0.0
    %743 = vmatmul.mubr.f32.gmra.mrb[0].mxu0 %v303
    %v744 = vpop.f32.mrb[0].mxu0
    %v745 = vadd.f32 %v96, %v744
    %v746 = vpop.f32.mrb[0].mxu0
    %747 = vmatprep.mubr.f32.mxu0 0.0
    %748 = vmatmul.mubr.f32.gmra.mrb[0].mxu0 %v306
    %v749 = vpop.f32.mrb[0].mxu0
    %v750 = vadd.f32 %v96, %v749
    %v751 = vpop.f32.mrb[0].mxu0
    %752 = vmatprep.mubr.f32.mxu0 0.0
    %753 = vmatmul.mubr.f32.gmra.mrb[0].mxu0 %v309
    %v754 = vpop.f32.mrb[0].mxu0
    %v755 = vadd.f32 %v96, %v754
    %v756 = vpop.f32.mrb[0].mxu0
    %757 = vmatprep.mubr.f32.mxu0 0.0
    %758 = vmatmul.mubr.f32.gmra.mrb[0].mxu0 %v312
    %v759 = vpop.f32.mrb[0].mxu0
    %v760 = vadd.f32 %v96, %v759
    %v761 = vpop.f32.mrb[0].mxu0
    %762 = vmatprep.mubr.f32.mxu0 0.0
    %763 = vmatmul.mubr.f32.gmra.mrb[0].mxu0 %v315
    %v764 = vpop.f32.mrb[0].mxu0
    %v765 = vadd.f32 %v96, %v764
    %v766 = vpop.f32.mrb[0].mxu0
    %767 = vmatprep.mubr.f32.mxu0 0.0
    %768 = vmatmul.mubr.f32.gmra.mrb[0].mxu0 %v318
    %v769 = vpop.f32.mrb[0].mxu0
    %v770 = vadd.f32 %v96, %v769
    %v771 = vpop.f32.mrb[0].mxu0
    %772 = vmatprep.mubr.f32.mxu0 0.0
    %773 = vmatmul.mubr.f32.gmra.mrb[0].mxu0 %v321
    %v774 = vpop.f32.mrb[0].mxu0
    %v775 = vadd.f32 %v96, %v774
    %v776 = vpop.f32.mrb[0].mxu0
    %777 = vmatprep.mubr.f32.mxu0 0.0
    %778 = vmatmul.mubr.f32.gmra.mrb[0].mxu0 %v324
    %v779 = vpop.f32.mrb[0].mxu0
    %v780 = vadd.f32 %v96, %v779
    %v781 = vpop.f32.mrb[0].mxu0
    %782 = vmatprep.mubr.f32.mxu0 0.0
    %783 = vmatmul.mubr.f32.gmra.mrb[0].mxu0 %v327
    %v784 = vpop.f32.mrb[0].mxu0
    %v785 = vadd.f32 %v96, %v784
    %v786 = vpop.f32.mrb[0].mxu0
    %787 = vmatprep.mubr.f32.mxu0 0.0
    %788 = vmatmul.mubr.f32.gmra.mrb[0].mxu0 %v330
    %v789 = vpop.f32.mrb[0].mxu0
    %v790 = vadd.f32 %v96, %v789
    %v791 = vpop.f32.mrb[0].mxu0
    %792 = vmatprep.mubr.f32.mxu0 0.0
    %793 = vmatmul.mubr.f32.gmra.mrb[0].mxu0 %v333
    %v794 = vpop.f32.mrb[0].mxu0
    %v795 = vadd.f32 %v96, %v794
    %v796 = vpop.f32.mrb[0].mxu0
    %797 = vmatprep.mubr.f32.mxu0 0.0
    %798 = vmatmul.mubr.f32.gmra.mrb[0].mxu0 %v336
    %v799 = vpop.f32.mrb[0].mxu0
    %v800 = vadd.f32 %v96, %v799
    %v801 = vpop.f32.mrb[0].mxu0
    %802 = vdwg.mxu0
    %v803 = vmax.f32 %v405, 0.0
    %v804 = vmax.f32 %v410, 0.0
    %v805 = vmax.f32 %v415, 0.0
    %v806 = vmax.f32 %v420, 0.0
    %v807 = vmax.f32 %v425, 0.0
    %v808 = vmax.f32 %v430, 0.0
    %v809 = vmax.f32 %v435, 0.0
    %v810 = vmax.f32 %v440, 0.0
    %v811 = vmax.f32 %v445, 0.0
    %v812 = vmax.f32 %v450, 0.0
    %v813 = vmax.f32 %v455, 0.0
    %v814 = vmax.f32 %v460, 0.0
    %v815 = vmax.f32 %v465, 0.0
    %v816 = vmax.f32 %v470, 0.0
    %v817 = vmax.f32 %v475, 0.0
    %v818 = vmax.f32 %v480, 0.0
    %v819 = vmax.f32 %v485, 0.0
    %v820 = vmax.f32 %v490, 0.0
    %v821 = vmax.f32 %v495, 0.0
    %v822 = vmax.f32 %v500, 0.0
    %v823 = vmax.f32 %v505, 0.0
    %v824 = vmax.f32 %v510, 0.0
    %v825 = vmax.f32 %v515, 0.0
    %v826 = vmax.f32 %v520, 0.0
    %v827 = vmax.f32 %v525, 0.0
    %v828 = vmax.f32 %v530, 0.0
    %v829 = vmax.f32 %v535, 0.0
    %v830 = vmax.f32 %v540, 0.0
    %v831 = vmax.f32 %v545, 0.0
    %v832 = vmax.f32 %v550, 0.0
    %v833 = vmax.f32 %v555, 0.0
    %v834 = vmax.f32 %v560, 0.0
    %v835 = vmax.f32 %v565, 0.0
    %v836 = vmax.f32 %v570, 0.0
    %v837 = vmax.f32 %v575, 0.0
    %v838 = vmax.f32 %v580, 0.0
    %v839 = vmax.f32 %v585, 0.0
    %v840 = vmax.f32 %v590, 0.0
    %v841 = vmax.f32 %v595, 0.0
    %v842 = vmax.f32 %v600, 0.0
    %v843 = vmax.f32 %v605, 0.0
    %v844 = vmax.f32 %v610, 0.0
    %v845 = vmax.f32 %v615, 0.0
    %v846 = vmax.f32 %v620, 0.0
    %v847 = vmax.f32 %v625, 0.0
    %v848 = vmax.f32 %v630, 0.0
    %v849 = vmax.f32 %v635, 0.0
    %v850 = vmax.f32 %v640, 0.0
    %v851 = vmax.f32 %v645, 0.0
    %v852 = vmax.f32 %v650, 0.0
    %v853 = vmax.f32 %v655, 0.0
    %v854 = vmax.f32 %v660, 0.0
    %v855 = vmax.f32 %v665, 0.0
    %v856 = vmax.f32 %v670, 0.0
    %v857 = vmax.f32 %v675, 0.0
    %v858 = vmax.f32 %v680, 0.0
    %v859 = vmax.f32 %v685, 0.0
    %v860 = vmax.f32 %v690, 0.0
    %v861 = vmax.f32 %v695, 0.0
    %v862 = vmax.f32 %v700, 0.0
    %v863 = vmax.f32 %v705, 0.0
    %v864 = vmax.f32 %v710, 0.0
    %v865 = vmax.f32 %v715, 0.0
    %v866 = vmax.f32 %v720, 0.0
    %v867 = vmax.f32 %v725, 0.0
    %v868 = vmax.f32 %v730, 0.0
    %v869 = vmax.f32 %v735, 0.0
    %v870 = vmax.f32 %v740, 0.0
    %v871 = vmax.f32 %v745, 0.0
    %v872 = vmax.f32 %v750, 0.0
    %v873 = vmax.f32 %v755, 0.0
    %v874 = vmax.f32 %v760, 0.0
    %v875 = vmax.f32 %v765, 0.0
    %v876 = vmax.f32 %v770, 0.0
    %v877 = vmax.f32 %v775, 0.0
    %v878 = vmax.f32 %v780, 0.0
    %v879 = vmax.f32 %v785, 0.0
    %v880 = vmax.f32 %v790, 0.0
    %v881 = vmax.f32 %v795, 0.0
    %v882 = vmax.f32 %v800, 0.0
    %v883 = vld [vmem:[%s1] sm:$0xff]
    %v884 = vld [vmem:[%s1 + $0x8] sm:$0x3]
    %v887 = vcombine.high %v883, %v883
    %v889 = vunpack.c.l.s4 1983009808
    %v890 = vunpack.c.0.s8 %v889
    %v891 = vlaneseq
    %v892 = vshrl.u32 %v891, 7
    %v893 = vsub.s32 %v890, %v892
    %v894 = vrot.slane %v883, %v893
    %v896 = vunpack.c.l.s4 1983009808
    %v897 = vunpack.c.0.s8 %v896
    %v898 = vlaneseq
    %v899 = vshrl.u32 %v898, 7
    %v900 = vsub.s32 %v897, %v899
    %v901 = vrot.slane %v887, %v900
    %v902 = vcombine.high %v894, %v894
    %v903 = vcombine.high %v901, %v901
    %v905 = vunpack.c.l.s4 1983009808
    %v906 = vunpack.c.0.s8 %v905
    %v907 = vlaneseq
    %v908 = vshrl.u32 %v907, 7
    %v909 = vsub.s32 %v906, %v908
    %v910 = vrot.slane %v884, %v909
    %916 = vmatprep.subr.mxu0 0.0
    %917 = vmatpush1.msra.mxu0 %v803
    %918 = vmatprep.subr.mxu0 0.0
    %919 = vmatpush1.msra.mxu0 %v804
    %920 = vmatprep.subr.mxu0 0.0
    %921 = vmatpush1.msra.mxu0 %v805
    %922 = vmatprep.subr.mxu0 0.0
    %923 = vmatpush1.msra.mxu0 %v806
    %924 = vmatprep.subr.mxu0 0.0
    %925 = vmatpush1.msra.mxu0 %v807
    %926 = vmatprep.subr.mxu0 0.0
    %927 = vmatpush1.msra.mxu0 %v808
    %928 = vmatprep.subr.mxu0 0.0
    %929 = vmatpush1.msra.mxu0 %v809
    %930 = vmatprep.subr.mxu0 0.0
    %931 = vmatpush1.msra.mxu0 %v810
    %932 = vmatprep.subr.mxu0 0.0
    %933 = vmatpush1.msra.mxu0 %v811
    %934 = vmatprep.subr.mxu0 0.0
    %935 = vmatpush1.msra.mxu0 %v812
    %936 = vmatprep.subr.mxu0 0.0
    %937 = vmatpush1.msra.mxu0 %v813
    %938 = vmatprep.subr.mxu0 0.0
    %939 = vmatpush1.msra.mxu0 %v814
    %940 = vmatprep.subr.mxu0 0.0
    %941 = vmatpush1.msra.mxu0 %v815
    %942 = vmatprep.subr.mxu0 0.0
    %943 = vmatpush1.msra.mxu0 %v816
    %944 = vmatprep.subr.mxu0 0.0
    %945 = vmatpush1.msra.mxu0 %v817
    %946 = vmatprep.subr.mxu0 0.0
    %947 = vmatpush1.msra.mxu0 %v818
    %948 = vmatprep.subr.mxu0 0.0
    %949 = vmatpush1.msra.mxu0 %v819
    %950 = vmatprep.subr.mxu0 0.0
    %951 = vmatpush1.msra.mxu0 %v820
    %952 = vmatprep.subr.mxu0 0.0
    %953 = vmatpush1.msra.mxu0 %v821
    %954 = vmatprep.subr.mxu0 0.0
    %955 = vmatpush1.msra.mxu0 %v822
    %956 = vmatprep.subr.mxu0 0.0
    %957 = vmatpush1.msra.mxu0 %v823
    %958 = vmatprep.subr.mxu0 0.0
    %959 = vmatpush1.msra.mxu0 %v824
    %960 = vmatprep.subr.mxu0 0.0
    %961 = vmatpush1.msra.mxu0 %v825
    %962 = vmatprep.subr.mxu0 0.0
    %963 = vmatpush1.msra.mxu0 %v826
    %964 = vmatprep.subr.mxu0 0.0
    %965 = vmatpush1.msra.mxu0 %v827
    %966 = vmatprep.subr.mxu0 0.0
    %967 = vmatpush1.msra.mxu0 %v828
    %968 = vmatprep.subr.mxu0 0.0
    %969 = vmatpush1.msra.mxu0 %v829
    %970 = vmatprep.subr.mxu0 0.0
    %971 = vmatpush1.msra.mxu0 %v830
    %972 = vmatprep.subr.mxu0 0.0
    %973 = vmatpush1.msra.mxu0 %v831
    %974 = vmatprep.subr.mxu0 0.0
    %975 = vmatpush1.msra.mxu0 %v832
    %976 = vmatprep.subr.mxu0 0.0
    %977 = vmatpush1.msra.mxu0 %v833
    %978 = vmatprep.subr.mxu0 0.0
    %979 = vmatpush1.msra.mxu0 %v834
    %980 = vmatprep.mubr.f32.mxu0 %v902
    %981 = vmatmul.mubr.f32.gmra.mrb[0].mxu0 %v894
    %v982 = vpop.f32.mrb[0].mxu0
    %v983 = vadd.f32 0.0, %v982
    %v984 = vpop.f32.mrb[0].mxu0
    %985 = vdwg.mxu0
    %986 = vmatprep.subr.mxu0 0.0
    %987 = vmatpush1.msra.mxu0 %v835
    %988 = vmatprep.subr.mxu0 0.0
    %989 = vmatpush1.msra.mxu0 %v836
    %990 = vmatprep.subr.mxu0 0.0
    %991 = vmatpush1.msra.mxu0 %v837
    %992 = vmatprep.subr.mxu0 0.0
    %993 = vmatpush1.msra.mxu0 %v838
    %994 = vmatprep.subr.mxu0 0.0
    %995 = vmatpush1.msra.mxu0 %v839
    %996 = vmatprep.subr.mxu0 0.0
    %997 = vmatpush1.msra.mxu0 %v840
    %998 = vmatprep.subr.mxu0 0.0
    %999 = vmatpush1.msra.mxu0 %v841
    %1000 = vmatprep.subr.mxu0 0.0
    %1001 = vmatpush1.msra.mxu0 %v842
    %1002 = vmatprep.subr.mxu0 0.0
    %1003 = vmatpush1.msra.mxu0 %v843
    %1004 = vmatprep.subr.mxu0 0.0
    %1005 = vmatpush1.msra.mxu0 %v844
    %1006 = vmatprep.subr.mxu0 0.0
    %1007 = vmatpush1.msra.mxu0 %v845
    %1008 = vmatprep.subr.mxu0 0.0
    %1009 = vmatpush1.msra.mxu0 %v846
    %1010 = vmatprep.subr.mxu0 0.0
    %1011 = vmatpush1.msra.mxu0 %v847
    %1012 = vmatprep.subr.mxu0 0.0
    %1013 = vmatpush1.msra.mxu0 %v848
    %1014 = vmatprep.subr.mxu0 0.0
    %1015 = vmatpush1.msra.mxu0 %v849
    %1016 = vmatprep.subr.mxu0 0.0
    %1017 = vmatpush1.msra.mxu0 %v850
    %1018 = vmatprep.subr.mxu0 0.0
    %1019 = vmatpush1.msra.mxu0 %v851
    %1020 = vmatprep.subr.mxu0 0.0
    %1021 = vmatpush1.msra.mxu0 %v852
    %1022 = vmatprep.subr.mxu0 0.0
    %1023 = vmatpush1.msra.mxu0 %v853
    %1024 = vmatprep.subr.mxu0 0.0
    %1025 = vmatpush1.msra.mxu0 %v854
    %1026 = vmatprep.subr.mxu0 0.0
    %1027 = vmatpush1.msra.mxu0 %v855
    %1028 = vmatprep.subr.mxu0 0.0
    %1029 = vmatpush1.msra.mxu0 %v856
    %1030 = vmatprep.subr.mxu0 0.0
    %1031 = vmatpush1.msra.mxu0 %v857
    %1032 = vmatprep.subr.mxu0 0.0
    %1033 = vmatpush1.msra.mxu0 %v858
    %1034 = vmatprep.subr.mxu0 0.0
    %1035 = vmatpush1.msra.mxu0 %v859
    %1036 = vmatprep.subr.mxu0 0.0
    %1037 = vmatpush1.msra.mxu0 %v860
    %1038 = vmatprep.subr.mxu0 0.0
    %1039 = vmatpush1.msra.mxu0 %v861
    %1040 = vmatprep.subr.mxu0 0.0
    %1041 = vmatpush1.msra.mxu0 %v862
    %1042 = vmatprep.subr.mxu0 0.0
    %1043 = vmatpush1.msra.mxu0 %v863
    %1044 = vmatprep.subr.mxu0 0.0
    %1045 = vmatpush1.msra.mxu0 %v864
    %1046 = vmatprep.subr.mxu0 0.0
    %1047 = vmatpush1.msra.mxu0 %v865
    %1048 = vmatprep.subr.mxu0 0.0
    %1049 = vmatpush1.msra.mxu0 %v866
    %1050 = vmatprep.mubr.f32.mxu0 %v903
    %1051 = vmatmul.mubr.f32.gmra.mrb[0].mxu0 %v901
    %v1052 = vpop.f32.mrb[0].mxu0
    %v1053 = vadd.f32 %v983, %v1052
    %v1054 = vpop.f32.mrb[0].mxu0
    %1055 = vdwg.mxu0
    %1056 = vmatprep.subr.mxu0 0.0
    %1057 = vmatpush1.msra.mxu0 %v867
    %1058 = vmatprep.subr.mxu0 0.0
    %1059 = vmatpush1.msra.mxu0 %v868
    %1060 = vmatprep.subr.mxu0 0.0
    %1061 = vmatpush1.msra.mxu0 %v869
    %1062 = vmatprep.subr.mxu0 0.0
    %1063 = vmatpush1.msra.mxu0 %v870
    %1064 = vmatprep.subr.mxu0 0.0
    %1065 = vmatpush1.msra.mxu0 %v871
    %1066 = vmatprep.subr.mxu0 0.0
    %1067 = vmatpush1.msra.mxu0 %v872
    %1068 = vmatprep.subr.mxu0 0.0
    %1069 = vmatpush1.msra.mxu0 %v873
    %1070 = vmatprep.subr.mxu0 0.0
    %1071 = vmatpush1.msra.mxu0 %v874
    %1072 = vmatprep.subr.mxu0 0.0
    %1073 = vmatpush1.msra.mxu0 %v875
    %1074 = vmatprep.subr.mxu0 0.0
    %1075 = vmatpush1.msra.mxu0 %v876
    %1076 = vmatprep.subr.mxu0 0.0
    %1077 = vmatpush1.msra.mxu0 %v877
    %1078 = vmatprep.subr.mxu0 0.0
    %1079 = vmatpush1.msra.mxu0 %v878
    %1080 = vmatprep.subr.mxu0 0.0
    %1081 = vmatpush1.msra.mxu0 %v879
    %1082 = vmatprep.subr.mxu0 0.0
    %1083 = vmatpush1.msra.mxu0 %v880
    %1084 = vmatprep.subr.mxu0 0.0
    %1085 = vmatpush1.msra.mxu0 %v881
    %1086 = vmatprep.subr.mxu0 0.0
    %1087 = vmatpush1.msra.mxu0 %v882
    %1088 = vmatprep.subr.mxu0 0.0
    %1089 = vmatpush1.msra.mxu0 0.0
    %1090 = vmatprep.subr.mxu0 0.0
    %1091 = vmatpush1.msra.mxu0 0.0
    %1092 = vmatprep.subr.mxu0 0.0
    %1093 = vmatpush1.msra.mxu0 0.0
    %1094 = vmatprep.subr.mxu0 0.0
    %1095 = vmatpush1.msra.mxu0 0.0
    %1096 = vmatprep.subr.mxu0 0.0
    %1097 = vmatpush1.msra.mxu0 0.0
    %1098 = vmatprep.subr.mxu0 0.0
    %1099 = vmatpush1.msra.mxu0 0.0
    %1100 = vmatprep.subr.mxu0 0.0
    %1101 = vmatpush1.msra.mxu0 0.0
    %1102 = vmatprep.subr.mxu0 0.0
    %1103 = vmatpush1.msra.mxu0 0.0
    %1104 = vmatprep.subr.mxu0 0.0
    %1105 = vmatpush1.msra.mxu0 0.0
    %1106 = vmatprep.subr.mxu0 0.0
    %1107 = vmatpush1.msra.mxu0 0.0
    %1108 = vmatprep.subr.mxu0 0.0
    %1109 = vmatpush1.msra.mxu0 0.0
    %1110 = vmatprep.subr.mxu0 0.0
    %1111 = vmatpush1.msra.mxu0 0.0
    %1112 = vmatprep.subr.mxu0 0.0
    %1113 = vmatpush1.msra.mxu0 0.0
    %1114 = vmatprep.subr.mxu0 0.0
    %1115 = vmatpush1.msra.mxu0 0.0
    %1116 = vmatprep.subr.mxu0 0.0
    %1117 = vmatpush1.msra.mxu0 0.0
    %1118 = vmatprep.subr.mxu0 0.0
    %1119 = vmatpush1.msra.mxu0 0.0
    %1120 = vmatprep.mubr.f32.mxu0 0.0
    %1121 = vmatmul.mubr.f32.gmra.mrb[0].mxu0 %v910
    %v1122 = vpop.f32.mrb[0].mxu0
    %v1123 = vadd.f32 %v1053, %v1122
    %v1124 = vpop.f32.mrb[0].mxu0
    %1125 = vdwg.mxu0
    %v1126 = vld [vmem:[%s2 + $0x20] sm:$0xff]
    %v1127 = vld [vmem:[%s2 + $0x30] sm:$0xff]
    %v1128 = vld [vmem:[%s2 + $0x40] ss:$0 sm:$0xff]
    %vm1129 = vcmask 130048
    %v1131 = vsel %vm1129, %v1123, 0
    %1133 = vmatprep.subr.mxu0 0.0
    %1134 = vmatpush1.msra.mxu0 %v1126
    %1135 = vmatprep.subr.mxu0 0.0
    %1136 = vmatpush1.msra.mxu0 %v1127
    %1137 = vmatprep.subr.mxu0 0.0
    %1138 = vmatpush1.msra.mxu0 0.0
    %1139 = vmatprep.subr.mxu0 0.0
    %1140 = vmatpush1.msra.mxu0 0.0
    %1141 = vmatprep.subr.mxu0 0.0
    %1142 = vmatpush1.msra.mxu0 0.0
    %1143 = vmatprep.subr.mxu0 0.0
    %1144 = vmatpush1.msra.mxu0 0.0
    %1145 = vmatprep.subr.mxu0 0.0
    %1146 = vmatpush1.msra.mxu0 0.0
    %1147 = vmatprep.subr.mxu0 0.0
    %1148 = vmatpush1.msra.mxu0 0.0
    %1149 = vmatprep.subr.mxu0 0.0
    %1150 = vmatpush1.msra.mxu0 0.0
    %1151 = vmatprep.subr.mxu0 0.0
    %1152 = vmatpush1.msra.mxu0 0.0
    %1153 = vmatprep.subr.mxu0 0.0
    %1154 = vmatpush1.msra.mxu0 0.0
    %1155 = vmatprep.subr.mxu0 0.0
    %1156 = vmatpush1.msra.mxu0 0.0
    %1157 = vmatprep.subr.mxu0 0.0
    %1158 = vmatpush1.msra.mxu0 0.0
    %1159 = vmatprep.subr.mxu0 0.0
    %1160 = vmatpush1.msra.mxu0 0.0
    %1161 = vmatprep.subr.mxu0 0.0
    %1162 = vmatpush1.msra.mxu0 0.0
    %1163 = vmatprep.subr.mxu0 0.0
    %1164 = vmatpush1.msra.mxu0 0.0
    %1165 = vmatprep.subr.mxu0 0.0
    %1166 = vmatpush1.msra.mxu0 0.0
    %1167 = vmatprep.subr.mxu0 0.0
    %1168 = vmatpush1.msra.mxu0 0.0
    %1169 = vmatprep.subr.mxu0 0.0
    %1170 = vmatpush1.msra.mxu0 0.0
    %1171 = vmatprep.subr.mxu0 0.0
    %1172 = vmatpush1.msra.mxu0 0.0
    %1173 = vmatprep.subr.mxu0 0.0
    %1174 = vmatpush1.msra.mxu0 0.0
    %1175 = vmatprep.subr.mxu0 0.0
    %1176 = vmatpush1.msra.mxu0 0.0
    %1177 = vmatprep.subr.mxu0 0.0
    %1178 = vmatpush1.msra.mxu0 0.0
    %1179 = vmatprep.subr.mxu0 0.0
    %1180 = vmatpush1.msra.mxu0 0.0
    %1181 = vmatprep.subr.mxu0 0.0
    %1182 = vmatpush1.msra.mxu0 0.0
    %1183 = vmatprep.subr.mxu0 0.0
    %1184 = vmatpush1.msra.mxu0 0.0
    %1185 = vmatprep.subr.mxu0 0.0
    %1186 = vmatpush1.msra.mxu0 0.0
    %1187 = vmatprep.subr.mxu0 0.0
    %1188 = vmatpush1.msra.mxu0 0.0
    %1189 = vmatprep.subr.mxu0 0.0
    %1190 = vmatpush1.msra.mxu0 0.0
    %1191 = vmatprep.subr.mxu0 0.0
    %1192 = vmatpush1.msra.mxu0 0.0
    %1193 = vmatprep.subr.mxu0 0.0
    %1194 = vmatpush1.msra.mxu0 0.0
    %1195 = vmatprep.subr.mxu0 0.0
    %1196 = vmatpush1.msra.mxu0 0.0
    %1197 = vmatprep.mubr.f32.mxu0 0.0
    %1198 = vmatmul.mubr.f32.gmra.mrb[0].mxu0 %v1131
    %v1199 = vpop.f32.mrb[0].mxu0
    %v1200 = vadd.f32 %v1128, %v1199
    %v1201 = vpop.f32.mrb[0].mxu0
    %1202 = vdwg.mxu0
    %v1203 = vmax.f32 %v1200, 0.0
    %1205 = vrot.lane.b32.xlu0 %v1203, 96
    %v1206 = vpop.permute.xlu0 %1205
    %v1208 = vadd.f32 %v1203, %v1206
    %1209 = vrot.lane.b32.xlu0 %v1203, 64
    %v1210 = vpop.permute.xlu0 %1209
    %v1212 = vadd.f32 %v1208, %v1210
    %1213 = vrot.lane.b32.xlu0 %v1203, 32
    %v1214 = vpop.permute.xlu0 %1213
    %v1216 = vadd.f32 %v1212, %v1214
    %v1217 = vmul.f32 %v1216, 0.25
    %v1218 = vld [vmem:[%s2 + $0x50] sm:$0xff]
    %v1219 = vld [vmem:[%s2 + $0x58] sm:$0xff]
    %v1220 = vld [vmem:[%s2 + $0x60] sm:$0xff]
    %v1221 = vld [vmem:[%s2 + $0x68] sm:$0xff]
    %v1222 = vld [vmem:[%s2 + $0x70] sm:$0xff]
    %v1223 = vld [vmem:[%s2 + $0x78] sm:$0xff]
    %v1224 = vld [vmem:[%s2 + $0x80] sm:$0xff]
    %v1225 = vld [vmem:[%s2 + $0x88] sm:$0xff]
    %s1226 = scalar_lea.vmem %s2, 144
    %v1227 = vld [vmem:[%s1226] ss:$8 sm:$0x3]
    %v1229 = vlaneseq
    %v1230 = vshrl.u32 %v1229, 7
    %v1231 = vsub.s32 0, %v1230
    %v1232 = vrot.slane %v1227, %v1231
    %v1233 = vlaneseq
    %v1234 = vshrl.u32 %v1233, 7
    %v1235 = vsub.s32 1, %v1234
    %v1236 = vrot.slane %v1227, %v1235
    %vm1239 = vcmask 261120
    %v1241 = vsel %vm1239, %v1217, 0
    %1243 = vmatprep.subr.mxu0 %v1219
    %1244 = vmatpush1.msra.mxu0 %v1218
    %1245 = vmatprep.subr.mxu0 %v1221
    %1246 = vmatpush1.msra.mxu0 %v1220
    %1247 = vmatprep.subr.mxu0 %v1223
    %1248 = vmatpush1.msra.mxu0 %v1222
    %1249 = vmatprep.subr.mxu0 %v1225
    %1250 = vmatpush1.msra.mxu0 %v1224
    %1251 = vmatprep.subr.mxu0 0.0
    %1252 = vmatpush1.msra.mxu0 0.0
    %1253 = vmatprep.subr.mxu0 0.0
    %1254 = vmatpush1.msra.mxu0 0.0
    %1255 = vmatprep.subr.mxu0 0.0
    %1256 = vmatpush1.msra.mxu0 0.0
    %1257 = vmatprep.subr.mxu0 0.0
    %1258 = vmatpush1.msra.mxu0 0.0
    %1259 = vmatprep.subr.mxu0 0.0
    %1260 = vmatpush1.msra.mxu0 0.0
    %1261 = vmatprep.subr.mxu0 0.0
    %1262 = vmatpush1.msra.mxu0 0.0
    %1263 = vmatprep.subr.mxu0 0.0
    %1264 = vmatpush1.msra.mxu0 0.0
    %1265 = vmatprep.subr.mxu0 0.0
    %1266 = vmatpush1.msra.mxu0 0.0
    %1267 = vmatprep.subr.mxu0 0.0
    %1268 = vmatpush1.msra.mxu0 0.0
    %1269 = vmatprep.subr.mxu0 0.0
    %1270 = vmatpush1.msra.mxu0 0.0
    %1271 = vmatprep.subr.mxu0 0.0
    %1272 = vmatpush1.msra.mxu0 0.0
    %1273 = vmatprep.subr.mxu0 0.0
    %1274 = vmatpush1.msra.mxu0 0.0
    %1275 = vmatprep.subr.mxu0 0.0
    %1276 = vmatpush1.msra.mxu0 0.0
    %1277 = vmatprep.subr.mxu0 0.0
    %1278 = vmatpush1.msra.mxu0 0.0
    %1279 = vmatprep.subr.mxu0 0.0
    %1280 = vmatpush1.msra.mxu0 0.0
    %1281 = vmatprep.subr.mxu0 0.0
    %1282 = vmatpush1.msra.mxu0 0.0
    %1283 = vmatprep.subr.mxu0 0.0
    %1284 = vmatpush1.msra.mxu0 0.0
    %1285 = vmatprep.subr.mxu0 0.0
    %1286 = vmatpush1.msra.mxu0 0.0
    %1287 = vmatprep.subr.mxu0 0.0
    %1288 = vmatpush1.msra.mxu0 0.0
    %1289 = vmatprep.subr.mxu0 0.0
    %1290 = vmatpush1.msra.mxu0 0.0
    %1291 = vmatprep.subr.mxu0 0.0
    %1292 = vmatpush1.msra.mxu0 0.0
    %1293 = vmatprep.subr.mxu0 0.0
    %1294 = vmatpush1.msra.mxu0 0.0
    %1295 = vmatprep.subr.mxu0 0.0
    %1296 = vmatpush1.msra.mxu0 0.0
    %1297 = vmatprep.subr.mxu0 0.0
    %1298 = vmatpush1.msra.mxu0 0.0
    %1299 = vmatprep.subr.mxu0 0.0
    %1300 = vmatpush1.msra.mxu0 0.0
    %1301 = vmatprep.subr.mxu0 0.0
    %1302 = vmatpush1.msra.mxu0 0.0
    %1303 = vmatprep.subr.mxu0 0.0
    %1304 = vmatpush1.msra.mxu0 0.0
    %1305 = vmatprep.subr.mxu0 0.0
    %1306 = vmatpush1.msra.mxu0 0.0
    %1307 = vmatprep.mubr.f32.mxu0 0.0
    %1308 = vmatmul.mubr.f32.gmra.mrb[0].mxu0 %v1241
    %v1309 = vpop.f32.mrb[0].mxu0
    %v1310 = vadd.f32 %v1232, %v1309
    %v1311 = vpop.f32.mrb[0].mxu0
    %v1312 = vadd.f32 %v1236, %v1311
    %1313 = vdwg.mxu0
    %v1314 = vmax.f32 %v1310, 0.0
    %v1315 = vmax.f32 %v1312, 0.0
    %1317 = vrot.lane.b32.xlu0 %v1314, 64
    %v1318 = vpop.permute.xlu0 %1317
    %v1320 = vadd.f32 %v1314, %v1318
    %v1321 = vadd.f32 %v1320, %v1315
    %1323 = vrot.lane.b32.xlu0 %v1315, 64
    %v1324 = vpop.permute.xlu0 %1323
    %v1326 = vadd.f32 %v1321, %v1324
    %v1327 = vmul.f32 %v1326, 0.25
    %v1328 = vld [vmem:[%s2 + $0xa0] sm:$0xff]
    %v1329 = vld [vmem:[%s2 + $0xa8] sm:$0xff]
    %v1330 = vld [vmem:[%s2 + $0xb0] sm:$0xff]
    %v1331 = vld [vmem:[%s2 + $0xb8] sm:$0xff]
    %v1332 = vld [vmem:[%s2 + $0xc0] sm:$0xff]
    %v1333 = vld [vmem:[%s2 + $0xc8] sm:$0xff]
    %v1334 = vld [vmem:[%s2 + $0xd0] sm:$0xff]
    %v1335 = vld [vmem:[%s2 + $0xd8] sm:$0xff]
    %v1336 = vld [vmem:[%s2 + $0xe0] sm:$0xff]
    %v1337 = vld [vmem:[%s2 + $0xe8] sm:$0xff]
    %v1338 = vld [vmem:[%s2 + $0xf0] sm:$0xff]
    %v1339 = vld [vmem:[%s2 + $0xf8] sm:$0xff]
    %v1340 = vld [vmem:[%s2 + $0x100] sm:$0xff]
    %v1341 = vld [vmem:[%s2 + $0x108] sm:$0xff]
    %v1342 = vld [vmem:[%s2 + $0x110] sm:$0xff]
    %v1343 = vld [vmem:[%s2 + $0x118] sm:$0xff]
    %s1344 = scalar_lea.vmem %s2, 288
    %v1345 = vld [vmem:[%s1344] ss:$8 sm:$0x3]
    %v1347 = vlaneseq
    %v1348 = vshrl.u32 %v1347, 7
    %v1349 = vsub.s32 0, %v1348
    %v1350 = vrot.slane %v1345, %v1349
    %v1351 = vlaneseq
    %v1352 = vshrl.u32 %v1351, 7
    %v1353 = vsub.s32 1, %v1352
    %v1354 = vrot.slane %v1345, %v1353
    %vm1357 = vcmask 523264
    %v1359 = vsel %vm1357, %v1327, 0
    %1361 = vmatprep.subr.mxu0 %v1329
    %1362 = vmatpush1.msra.mxu0 %v1328
    %1363 = vmatprep.subr.mxu0 %v1331
    %1364 = vmatpush1.msra.mxu0 %v1330
    %1365 = vmatprep.subr.mxu0 %v1333
    %1366 = vmatpush1.msra.mxu0 %v1332
    %1367 = vmatprep.subr.mxu0 %v1335
    %1368 = vmatpush1.msra.mxu0 %v1334
    %1369 = vmatprep.subr.mxu0 %v1337
    %1370 = vmatpush1.msra.mxu0 %v1336
    %1371 = vmatprep.subr.mxu0 %v1339
    %1372 = vmatpush1.msra.mxu0 %v1338
    %1373 = vmatprep.subr.mxu0 %v1341
    %1374 = vmatpush1.msra.mxu0 %v1340
    %1375 = vmatprep.subr.mxu0 %v1343
    %1376 = vmatpush1.msra.mxu0 %v1342
    %1377 = vmatprep.subr.mxu0 0.0
    %1378 = vmatpush1.msra.mxu0 0.0
    %1379 = vmatprep.subr.mxu0 0.0
    %1380 = vmatpush1.msra.mxu0 0.0
    %1381 = vmatprep.subr.mxu0 0.0
    %1382 = vmatpush1.msra.mxu0 0.0
    %1383 = vmatprep.subr.mxu0 0.0
    %1384 = vmatpush1.msra.mxu0 0.0
    %1385 = vmatprep.subr.mxu0 0.0
    %1386 = vmatpush1.msra.mxu0 0.0
    %1387 = vmatprep.subr.mxu0 0.0
    %1388 = vmatpush1.msra.mxu0 0.0
    %1389 = vmatprep.subr.mxu0 0.0
    %1390 = vmatpush1.msra.mxu0 0.0
    %1391 = vmatprep.subr.mxu0 0.0
    %1392 = vmatpush1.msra.mxu0 0.0
    %1393 = vmatprep.subr.mxu0 0.0
    %1394 = vmatpush1.msra.mxu0 0.0
    %1395 = vmatprep.subr.mxu0 0.0
    %1396 = vmatpush1.msra.mxu0 0.0
    %1397 = vmatprep.subr.mxu0 0.0
    %1398 = vmatpush1.msra.mxu0 0.0
    %1399 = vmatprep.subr.mxu0 0.0
    %1400 = vmatpush1.msra.mxu0 0.0
    %1401 = vmatprep.subr.mxu0 0.0
    %1402 = vmatpush1.msra.mxu0 0.0
    %1403 = vmatprep.subr.mxu0 0.0
    %1404 = vmatpush1.msra.mxu0 0.0
    %1405 = vmatprep.subr.mxu0 0.0
    %1406 = vmatpush1.msra.mxu0 0.0
    %1407 = vmatprep.subr.mxu0 0.0
    %1408 = vmatpush1.msra.mxu0 0.0
    %1409 = vmatprep.subr.mxu0 0.0
    %1410 = vmatpush1.msra.mxu0 0.0
    %1411 = vmatprep.subr.mxu0 0.0
    %1412 = vmatpush1.msra.mxu0 0.0
    %1413 = vmatprep.subr.mxu0 0.0
    %1414 = vmatpush1.msra.mxu0 0.0
    %1415 = vmatprep.subr.mxu0 0.0
    %1416 = vmatpush1.msra.mxu0 0.0
    %1417 = vmatprep.subr.mxu0 0.0
    %1418 = vmatpush1.msra.mxu0 0.0
    %1419 = vmatprep.subr.mxu0 0.0
    %1420 = vmatpush1.msra.mxu0 0.0
    %1421 = vmatprep.subr.mxu0 0.0
    %1422 = vmatpush1.msra.mxu0 0.0
    %1423 = vmatprep.subr.mxu0 0.0
    %1424 = vmatpush1.msra.mxu0 0.0
    %1425 = vmatprep.mubr.f32.mxu0 0.0
    %1426 = vmatmul.mubr.f32.gmra.mrb[0].mxu0 %v1359
    %v1427 = vpop.f32.mrb[0].mxu0
    %v1428 = vadd.f32 %v1350, %v1427
    %v1429 = vpop.f32.mrb[0].mxu0
    %v1430 = vadd.f32 %v1354, %v1429
    %1431 = vdwg.mxu0
    %v1432 = vmax.f32 %v1428, 0.0
    %v1433 = vmax.f32 %v1430, 0.0
    %v1434 = vld [vmem:[%s2 + $0x130] sm:$0xff]
    %v1435 = vld [vmem:[%s2 + $0x140] sm:$0xff]
    %v1436 = vld [vmem:[%s2 + $0x150] sm:$0xff]
    %v1437 = vld [vmem:[%s2 + $0x160] sm:$0xff]
    %v1438 = vld [vmem:[%s2 + $0x170] sm:$0xff]
    %v1439 = vld [vmem:[%s2 + $0x180] sm:$0xff]
    %v1440 = vld [vmem:[%s2 + $0x190] sm:$0xff]
    %v1441 = vld [vmem:[%s2 + $0x1a0] sm:$0xff]
    %v1442 = vld [vmem:[%s2 + $0x1b0] sm:$0xff]
    %v1443 = vld [vmem:[%s2 + $0x1c0] sm:$0xff]
    %v1444 = vld [vmem:[%s2 + $0x1d0] sm:$0xff]
    %v1445 = vld [vmem:[%s2 + $0x1e0] sm:$0xff]
    %v1446 = vld [vmem:[%s2 + $0x1f0] sm:$0xff]
    %v1447 = vld [vmem:[%s2 + $0x200] sm:$0xff]
    %v1448 = vld [vmem:[%s2 + $0x210] sm:$0xff]
    %v1449 = vld [vmem:[%s2 + $0x220] sm:$0xff]
    %v1450 = vld [vmem:[%s2 + $0x230] sm:$0xff]
    %v1451 = vld [vmem:[%s2 + $0x240] sm:$0xff]
    %v1452 = vld [vmem:[%s2 + $0x250] sm:$0xff]
    %v1453 = vld [vmem:[%s2 + $0x260] sm:$0xff]
    %v1454 = vld [vmem:[%s2 + $0x270] sm:$0xff]
    %v1455 = vld [vmem:[%s2 + $0x280] sm:$0xff]
    %v1456 = vld [vmem:[%s2 + $0x290] sm:$0xff]
    %v1457 = vld [vmem:[%s2 + $0x2a0] sm:$0xff]
    %v1458 = vld [vmem:[%s2 + $0x2b0] sm:$0xff]
    %v1459 = vld [vmem:[%s2 + $0x2c0] sm:$0xff]
    %v1460 = vld [vmem:[%s2 + $0x2d0] sm:$0xff]
    %v1461 = vld [vmem:[%s2 + $0x2e0] sm:$0xff]
    %v1462 = vld [vmem:[%s2 + $0x2f0] sm:$0xff]
    %v1463 = vld [vmem:[%s2 + $0x300] sm:$0xff]
    %v1464 = vld [vmem:[%s2 + $0x310] sm:$0xff]
    %v1465 = vld [vmem:[%s2 + $0x320] sm:$0xff]
    %v1466 = vld [vmem:[%s2 + $0x330] ss:$0 sm:$0xff]
    %1467 = vmatprep.subr.mxu0 0.0
    %1468 = vmatpush1.msra.mxu0 %v1434
    %1469 = vmatprep.subr.mxu0 0.0
    %1470 = vmatpush1.msra.mxu0 %v1435
    %1471 = vmatprep.subr.mxu0 0.0
    %1472 = vmatpush1.msra.mxu0 %v1436
    %1473 = vmatprep.subr.mxu0 0.0
    %1474 = vmatpush1.msra.mxu0 %v1437
    %1475 = vmatprep.subr.mxu0 0.0
    %1476 = vmatpush1.msra.mxu0 %v1438
    %1477 = vmatprep.subr.mxu0 0.0
    %1478 = vmatpush1.msra.mxu0 %v1439
    %1479 = vmatprep.subr.mxu0 0.0
    %1480 = vmatpush1.msra.mxu0 %v1440
    %1481 = vmatprep.subr.mxu0 0.0
    %1482 = vmatpush1.msra.mxu0 %v1441
    %1483 = vmatprep.subr.mxu0 0.0
    %1484 = vmatpush1.msra.mxu0 %v1442
    %1485 = vmatprep.subr.mxu0 0.0
    %1486 = vmatpush1.msra.mxu0 %v1443
    %1487 = vmatprep.subr.mxu0 0.0
    %1488 = vmatpush1.msra.mxu0 %v1444
    %1489 = vmatprep.subr.mxu0 0.0
    %1490 = vmatpush1.msra.mxu0 %v1445
    %1491 = vmatprep.subr.mxu0 0.0
    %1492 = vmatpush1.msra.mxu0 %v1446
    %1493 = vmatprep.subr.mxu0 0.0
    %1494 = vmatpush1.msra.mxu0 %v1447
    %1495 = vmatprep.subr.mxu0 0.0
    %1496 = vmatpush1.msra.mxu0 %v1448
    %1497 = vmatprep.subr.mxu0 0.0
    %1498 = vmatpush1.msra.mxu0 %v1449
    %1499 = vmatprep.subr.mxu0 0.0
    %1500 = vmatpush1.msra.mxu0 %v1450
    %1501 = vmatprep.subr.mxu0 0.0
    %1502 = vmatpush1.msra.mxu0 %v1451
    %1503 = vmatprep.subr.mxu0 0.0
    %1504 = vmatpush1.msra.mxu0 %v1452
    %1505 = vmatprep.subr.mxu0 0.0
    %1506 = vmatpush1.msra.mxu0 %v1453
    %1507 = vmatprep.subr.mxu0 0.0
    %1508 = vmatpush1.msra.mxu0 %v1454
    %1509 = vmatprep.subr.mxu0 0.0
    %1510 = vmatpush1.msra.mxu0 %v1455
    %1511 = vmatprep.subr.mxu0 0.0
    %1512 = vmatpush1.msra.mxu0 %v1456
    %1513 = vmatprep.subr.mxu0 0.0
    %1514 = vmatpush1.msra.mxu0 %v1457
    %1515 = vmatprep.subr.mxu0 0.0
    %1516 = vmatpush1.msra.mxu0 %v1458
    %1517 = vmatprep.subr.mxu0 0.0
    %1518 = vmatpush1.msra.mxu0 %v1459
    %1519 = vmatprep.subr.mxu0 0.0
    %1520 = vmatpush1.msra.mxu0 %v1460
    %1521 = vmatprep.subr.mxu0 0.0
    %1522 = vmatpush1.msra.mxu0 %v1461
    %1523 = vmatprep.subr.mxu0 0.0
    %1524 = vmatpush1.msra.mxu0 %v1462
    %1525 = vmatprep.subr.mxu0 0.0
    %1526 = vmatpush1.msra.mxu0 %v1463
    %1527 = vmatprep.subr.mxu0 0.0
    %1528 = vmatpush1.msra.mxu0 %v1464
    %1529 = vmatprep.subr.mxu0 0.0
    %1530 = vmatpush1.msra.mxu0 %v1465
    %1531 = vmatprep.mubr.f32.mxu0 %v1433
    %1532 = vmatmul.mubr.f32.gmra.mrb[0].mxu0 %v1432
    %v1533 = vpop.f32.mrb[0].mxu0
    %v1534 = vadd.f32 %v1466, %v1533
    %v1535 = vpop.f32.mrb[0].mxu0
    %1536 = vdwg.mxu0
    %v1537 = vmax.f32 %v1534, 0.0
    %v1538 = vld [vmem:[%s2 + $0x340] sm:$0xff]
    %v1539 = vld [vmem:[%s2 + $0x350] sm:$0xff]
    %v1540 = vld [vmem:[%s2 + $0x360] sm:$0xff]
    %v1541 = vld [vmem:[%s2 + $0x370] sm:$0xff]
    %v1542 = vld [vmem:[%s2 + $0x380] sm:$0xff]
    %v1543 = vld [vmem:[%s2 + $0x390] sm:$0xff]
    %v1544 = vld [vmem:[%s2 + $0x3a0] sm:$0xff]
    %v1545 = vld [vmem:[%s2 + $0x3b0] sm:$0xff]
    %v1546 = vld [vmem:[%s2 + $0x3c0] sm:$0xff]
    %v1547 = vld [vmem:[%s2 + $0x3d0] sm:$0xff]
    %v1548 = vld [vmem:[%s2 + $0x3e0] sm:$0xff]
    %v1549 = vld [vmem:[%s2 + $0x3f0] sm:$0xff]
    %v1550 = vld [vmem:[%s2 + $0x400] sm:$0xff]
    %v1551 = vld [vmem:[%s2 + $0x410] sm:$0xff]
    %v1552 = vld [vmem:[%s2 + $0x420] sm:$0xff]
    %v1553 = vld [vmem:[%s2 + $0x430] sm:$0xff]
    %v1554 = vld [vmem:[%s2 + $0x440] ss:$0 sm:$0xff]
    %1555 = vmatprep.subr.mxu0 0.0
    %1556 = vmatpush1.msra.mxu0 %v1538
    %1557 = vmatprep.subr.mxu0 0.0
    %1558 = vmatpush1.msra.mxu0 %v1539
    %1559 = vmatprep.subr.mxu0 0.0
    %1560 = vmatpush1.msra.mxu0 %v1540
    %1561 = vmatprep.subr.mxu0 0.0
    %1562 = vmatpush1.msra.mxu0 %v1541
    %1563 = vmatprep.subr.mxu0 0.0
    %1564 = vmatpush1.msra.mxu0 %v1542
    %1565 = vmatprep.subr.mxu0 0.0
    %1566 = vmatpush1.msra.mxu0 %v1543
    %1567 = vmatprep.subr.mxu0 0.0
    %1568 = vmatpush1.msra.mxu0 %v1544
    %1569 = vmatprep.subr.mxu0 0.0
    %1570 = vmatpush1.msra.mxu0 %v1545
    %1571 = vmatprep.subr.mxu0 0.0
    %1572 = vmatpush1.msra.mxu0 %v1546
    %1573 = vmatprep.subr.mxu0 0.0
    %1574 = vmatpush1.msra.mxu0 %v1547
    %1575 = vmatprep.subr.mxu0 0.0
    %1576 = vmatpush1.msra.mxu0 %v1548
    %1577 = vmatprep.subr.mxu0 0.0
    %1578 = vmatpush1.msra.mxu0 %v1549
    %1579 = vmatprep.subr.mxu0 0.0
    %1580 = vmatpush1.msra.mxu0 %v1550
    %1581 = vmatprep.subr.mxu0 0.0
    %1582 = vmatpush1.msra.mxu0 %v1551
    %1583 = vmatprep.subr.mxu0 0.0
    %1584 = vmatpush1.msra.mxu0 %v1552
    %1585 = vmatprep.subr.mxu0 0.0
    %1586 = vmatpush1.msra.mxu0 %v1553
    %1587 = vmatprep.subr.mxu0 0.0
    %1588 = vmatpush1.msra.mxu0 0.0
    %1589 = vmatprep.subr.mxu0 0.0
    %1590 = vmatpush1.msra.mxu0 0.0
    %1591 = vmatprep.subr.mxu0 0.0
    %1592 = vmatpush1.msra.mxu0 0.0
    %1593 = vmatprep.subr.mxu0 0.0
    %1594 = vmatpush1.msra.mxu0 0.0
    %1595 = vmatprep.subr.mxu0 0.0
    %1596 = vmatpush1.msra.mxu0 0.0
    %1597 = vmatprep.subr.mxu0 0.0
    %1598 = vmatpush1.msra.mxu0 0.0
    %1599 = vmatprep.subr.mxu0 0.0
    %1600 = vmatpush1.msra.mxu0 0.0
    %1601 = vmatprep.subr.mxu0 0.0
    %1602 = vmatpush1.msra.mxu0 0.0
    %1603 = vmatprep.subr.mxu0 0.0
    %1604 = vmatpush1.msra.mxu0 0.0
    %1605 = vmatprep.subr.mxu0 0.0
    %1606 = vmatpush1.msra.mxu0 0.0
    %1607 = vmatprep.subr.mxu0 0.0
    %1608 = vmatpush1.msra.mxu0 0.0
    %1609 = vmatprep.subr.mxu0 0.0
    %1610 = vmatpush1.msra.mxu0 0.0
    %1611 = vmatprep.subr.mxu0 0.0
    %1612 = vmatpush1.msra.mxu0 0.0
    %1613 = vmatprep.subr.mxu0 0.0
    %1614 = vmatpush1.msra.mxu0 0.0
    %1615 = vmatprep.subr.mxu0 0.0
    %1616 = vmatpush1.msra.mxu0 0.0
    %1617 = vmatprep.subr.mxu0 0.0
    %1618 = vmatpush1.msra.mxu0 0.0
    %1619 = vmatprep.mubr.f32.mxu0 0.0
    %1620 = vmatmul.mubr.f32.gmra.mrb[0].mxu0 %v1537
    %v1621 = vpop.f32.mrb[0].mxu0
    %v1622 = vadd.f32 %v1554, %v1621
    %v1623 = vpop.f32.mrb[0].mxu0
    %1624 = vdwg.mxu0
    %vm1625 = vcmask 9216
    %v1626 = vsel %vm1625, %v1622, -inf
    %1627 = vmax.xlane.f32.xlu0 %v1626
    %v1628 = vpop.xlane.xlu0 %1627
    %v1629 = vsub.f32 %v1622, %v1628
    %v1630 = vmul.f32 %v1629, 1.442695
    %v1631 = vpow.pop %v1630
    %v1632 = vsel %vm1625, %v1631, 0.0
    %1633 = vadd.xlane.f32.xlu0 %v1632
    %v1634 = vpop.xlane.xlu0 %1633
    %v1635 = vrcp.pop %v1634
    %v1636 = vmul.f32 %v1634, %v1635
    %v1637 = vsub.f32 2.0, %v1636
    %v1638 = vmul.f32 %v1635, %v1637
    %v1639 = vmul.f32 %v1631, %v1638
    %1640 = vst.msk [vmem:[#allocation2] sm:$0x3] %vm1625, %v1639
    // Predicated region
    $region14: #{deeplenet_forward.1} parent=1 // pred_check
      _
    $region15: #{deeplenet_forward.1} parent=1 // pred_check_branch
      %1642 = sbr.rel (0) target = $region17
    $region16: #{deeplenet_forward.1} parent=1 // pred_region
      %s1644 = ssub.s32 32, 32
      %1645 = vsyncadd [#allocation3], %s1644
      %s1647 = sshll.u32 [#allocation2], 4
      %s1648 = int_to_ptr.vmem [resolvable:$true] %s1647
      %1650 = dma.vmem_to_hbm [thread:$0]  %s1648, 32, %s3, [#allocation3]
    $region17: #{deeplenet_forward.1} parent=1 // pred_fallthru
      _
    // Predicated region
    $region18: #{deeplenet_forward.1} parent=1 // pred_check
      _
    $region19: #{deeplenet_forward.1} parent=1 // pred_check_branch
      %1652 = sbr.rel (0) target = $region21
    $region20: #{deeplenet_forward.1} parent=1 // pred_region
      %1653 = dma.done [#allocation3], 32
    $region21: #{deeplenet_forward.1} parent=1 // pred_fallthru
      _
    %1654 = vsyncpa [#allocation3], 1

</llo_original>
